<compile_context>
chip_gen: v7x
topology: tpu7x:2x2x1
jax: 0.10.0
libtpu: 0.0.40
codegen_flags: <defaults>
</compile_context>

<pallas_src>
import functools

import jax
import jax.numpy as jnp
from jax.experimental import pallas as pl
from jax.experimental.pallas import tpu as pltpu

HIDDEN = 512  # fixed by the module definition


# --------------------------------------------------------------------------
# SiLU with a single EUP push:  x * sigmoid(x) == x * 0.5 * (1 + tanh(x/2))
# (Python-float literals are weakly typed, so this stays in `h`'s dtype.)
# --------------------------------------------------------------------------
def _silu(h):
    return h * 0.5 * (1.0 + jnp.tanh(h * 0.5))


# --------------------------------------------------------------------------
# Pallas kernel:
#   h1  = SiLU(text @ W1_text + xyxy @ W1_pos + b1)
#   h2  = SiLU(h1 @ W2 + b2)
#   out = h2 @ W3 + b3
# bf16 MXU operands, f32 accumulation; activations in f32 or bf16 (gated).
# --------------------------------------------------------------------------
def _mlp_kernel(text_ref, xyxy_ref, w1t_ref, w1p_ref, b1_ref, w2_ref, b2_ref,
                w3_ref, b3_ref, o_ref, *, act_dtype):
    h = jnp.dot(text_ref[...], w1t_ref[...], preferred_element_type=jnp.float32)
    h = h + jnp.dot(xyxy_ref[...], w1p_ref[...],
                    preferred_element_type=jnp.float32)
    h = _silu((h + b1_ref[...]).astype(act_dtype))
    h = jnp.dot(h.astype(jnp.bfloat16), w2_ref[...],
                preferred_element_type=jnp.float32)
    h = _silu((h + b2_ref[...]).astype(act_dtype))
    out = jnp.dot(h.astype(jnp.bfloat16), w3_ref[...],
                  preferred_element_type=jnp.float32)
    o_ref[...] = (out + b3_ref[...]).astype(o_ref.dtype)


# --------------------------------------------------------------------------
# FourierEmbedder (JAX glue): per freq -> [sin(f*x), cos(f*x)], concat on -1.
# --------------------------------------------------------------------------
def fourier_embed(x, num_freqs=8, temperature=100.0):
    freqs = temperature ** (jnp.arange(num_freqs, dtype=jnp.float32) / num_freqs)
    xf = x[..., None, :] * freqs[:, None]                  # (..., F, d)
    emb = jnp.stack([jnp.sin(xf), jnp.cos(xf)], axis=-2)   # (..., F, 2, d)
    return emb.reshape(*x.shape[:-1], num_freqs * 2 * x.shape[-1])


# --------------------------------------------------------------------------
# Helpers
# --------------------------------------------------------------------------
def _round_up(x, m):
    return ((x + m - 1) // m) * m


def _choose_tile_m(M, tile_m, min_tiles=1):
    """Multiple-of-8 row tile, >= min_tiles steps when possible, prefers a
    divisor of M so no row padding is needed."""
    tm = max(8, (min(tile_m, M) // 8) * 8)
    if M > 8 and pl.cdiv(M, tm) < min_tiles:
        tm = max(8, _round_up(pl.cdiv(M, min_tiles), 8))
    if M % tm != 0:
        for cand in range(tm, max(8, tm // 2) - 1, -8):
            if M % cand == 0:
                return cand
    return tm


def _bf16_activation_ok():
    """bf16 VPU/EUP exists on v6e / v7x; keep f32 activations on v5e/older."""
    try:
        kind = jax.devices()[0].device_kind.lower()
    except Exception:
        return False
    if "tpu" not in kind:
        return False
    return not any(old in kind for old in ("v2", "v3", "v4", "v5"))


# --------------------------------------------------------------------------
# PositionNet forward
# --------------------------------------------------------------------------
def position_net_forward(boxes, text_embeddings, params, *, fourier_freqs=8,
                         tile_m=1024, out_dtype=jnp.float32):
    B, Fr, N, D = boxes.shape
    w1, b1, w2, b2, w3, b3 = params
    in_dim = text_embeddings.shape[-1]
    out_dim = w3.shape[-1]
    pos_dim = fourier_freqs * 2 * D
    d_in = in_dim + pos_dim

    # --- inputs without the repeat_interleave / concat materializations ----
    # text rows, un-repeated: (B*N, in_dim)
    text2 = text_embeddings.reshape(B * N, in_dim).astype(jnp.bfloat16)
    # Fourier box rows, frame-major: (F, B*N, pos_dim)
    boxes_fm = jnp.transpose(boxes, (1, 0, 2, 3)).reshape(Fr, B * N, D)
    xyxy2 = fourier_embed(boxes_fm, num_freqs=fourier_freqs).astype(jnp.bfloat16)

    # --- row tiling over the un-repeated (b, n) row space ------------------
    Mbn = B * N
    min_row_tiles = max(1, pl.cdiv(4, Fr))      # >= 4 total grid steps (2/TC on v7x)
    tm = _choose_tile_m(Mbn, tile_m, min_tiles=min_row_tiles)
    Mp = _round_up(Mbn, tm)
    if Mp != Mbn:
        text2 = jnp.pad(text2, ((0, Mp - Mbn), (0, 0)))
        xyxy2 = jnp.pad(xyxy2, ((0, 0), (0, Mp - Mbn), (0, 0)))
    T = Mp // tm
    grid = (T, Fr)                              # frames innermost

    # --- lane-dense last layer (pad to a multiple of 128 cols, no more) ----
    out_pad = _round_up(out_dim, 128)
    if out_pad != out_dim:
        w3 = jnp.pad(w3, ((0, 0), (0, out_pad - out_dim)))
        b3 = jnp.pad(b3, ((0, 0), (0, out_pad - out_dim)))

    # Split W1 across the (text | fourier) feature halves; bf16 MXU operands.
    w1t = w1[:in_dim].astype(jnp.bfloat16)
    w1p = w1[in_dim:].astype(jnp.bfloat16)
    w2b = w2.astype(jnp.bfloat16)
    w3b = w3.astype(jnp.bfloat16)
    b1f = b1.astype(jnp.float32)
    b2f = b2.astype(jnp.float32)
    b3f = b3.astype(jnp.float32)

    act_dtype = jnp.bfloat16 if _bf16_activation_ok() else jnp.float32
    kernel = functools.partial(_mlp_kernel, act_dtype=act_dtype)

    M_total = Fr * Mp
    flops = 2 * M_total * (d_in * HIDDEN + HIDDEN * HIDDEN + HIDDEN * out_pad)
    bytes_accessed = (Mp * in_dim * 2 + Fr * Mp * pos_dim * 2
                      + Fr * Mp * out_pad * jnp.dtype(out_dtype).itemsize
                      + (d_in * HIDDEN + HIDDEN * HIDDEN + HIDDEN * out_pad) * 2
                      + (2 * HIDDEN + out_pad) * 4)

    out_k = pl.pallas_call(
        kernel,
        out_shape=jax.ShapeDtypeStruct((Fr, Mp, out_pad), out_dtype),
        grid_spec=pl.GridSpec(
            grid=grid,
            in_specs=[
                pl.BlockSpec((tm, in_dim), lambda j, f: (j, 0)),         # text
                pl.BlockSpec((None, tm, pos_dim), lambda j, f: (f, j, 0)),  # xyxy
                pl.BlockSpec((in_dim, HIDDEN), lambda j, f: (0, 0)),     # W1_text
                pl.BlockSpec((pos_dim, HIDDEN), lambda j, f: (0, 0)),    # W1_pos
                pl.BlockSpec((1, HIDDEN), lambda j, f: (0, 0)),          # b1
                pl.BlockSpec((HIDDEN, HIDDEN), lambda j, f: (0, 0)),     # W2
                pl.BlockSpec((1, HIDDEN), lambda j, f: (0, 0)),          # b2
                pl.BlockSpec((HIDDEN, out_pad), lambda j, f: (0, 0)),    # W3
                pl.BlockSpec((1, out_pad), lambda j, f: (0, 0)),         # b3
            ],
            out_specs=pl.BlockSpec((None, tm, out_pad), lambda j, f: (f, j, 0)),
        ),
        compiler_params=pltpu.CompilerParams(
            dimension_semantics=("parallel", "parallel")),
        cost_estimate=pl.CostEstimate(
            flops=flops,
            transcendentals=2 * M_total * HIDDEN,   # one tanh per SiLU element
            bytes_accessed=bytes_accessed),
    )(text2, xyxy2, w1t, w1p, b1f, w2b, b2f, w3b, b3f)

    # Slice padding off only when padding was actually applied, then restore
    # the (b, f, n) ordering expected by the module (single fused XLA copy).
    if Mp != Mbn or out_pad != out_dim:
        out_k = out_k[:, :Mbn, :out_dim]
    out = out_k.reshape(Fr, B, N, out_dim).transpose(1, 0, 2, 3)
    return out.reshape(B * Fr, N, out_dim)


# --------------------------------------------------------------------------
# Pure-JAX (f32) reference for correctness checking
# --------------------------------------------------------------------------
def position_net_ref(boxes, text_embeddings, params, fourier_freqs=8):
    B, Fr, N, D = boxes.shape
    w1, b1, w2, b2, w3, b3 = params
    text = jnp.repeat(text_embeddings, Fr, axis=0)
    xyxy = fourier_embed(boxes.reshape(B * Fr, N, D), num_freqs=fourier_freqs)
    x = jnp.concatenate([text, xyxy], axis=-1)
    h = jax.nn.silu(x @ w1 + b1[0])
    h = jax.nn.silu(h @ w2 + b2[0])
    return h @ w3 + b3[0]


if __name__ == "__main__":
    key = jax.random.PRNGKey(0)
    B, Fr, N = 2, 2, 8
    in_dim, out_dim, fourier_freqs = 64, 64, 8
    position_dim = fourier_freqs * 2 * 4            # 64
    d_in = in_dim + position_dim                    # 128

    ks = jax.random.split(key, 8)
    boxes = jax.random.uniform(ks[0], (B, Fr, N, 4), dtype=jnp.float32)
    text = jax.random.normal(ks[1], (B, N, in_dim), dtype=jnp.float32)

    # deterministic synthetic parameters (shapes from the nn.Linear defs)
    w1 = 0.05 * jax.random.normal(ks[2], (d_in, HIDDEN), dtype=jnp.float32)
    b1 = 0.05 * jax.random.normal(ks[3], (1, HIDDEN), dtype=jnp.float32)
    w2 = 0.05 * jax.random.normal(ks[4], (HIDDEN, HIDDEN), dtype=jnp.float32)
    b2 = 0.05 * jax.random.normal(ks[5], (1, HIDDEN), dtype=jnp.float32)
    w3 = 0.05 * jax.random.normal(ks[6], (HIDDEN, out_dim), dtype=jnp.float32)
    b3 = 0.05 * jax.random.normal(ks[7], (1, out_dim), dtype=jnp.float32)
    params = (w1, b1, w2, b2, w3, b3)

    out = position_net_forward(boxes, text, params, fourier_freqs=fourier_freqs)
    out = jax.block_until_ready(out)

    ref = position_net_ref(boxes, text, params, fourier_freqs=fourier_freqs)
    assert out.shape == (B * Fr, N, out_dim), out.shape
    assert jnp.allclose(out, ref, rtol=2e-2, atol=2e-2), "mismatch vs reference"

    print("KERNEL_OK")
</pallas_src>

<mosaic_0001>
module attributes {stable_mosaic.version = 11 : i64} {
  func.func @_mlp_kernel(%arg0: i32, %arg1: i32, %arg2: memref<8x64xbf16, #tpu.memory_space<vmem>>, %arg3: memref<1x8x64xbf16, #tpu.memory_space<vmem>>, %arg4: memref<64x512xbf16, #tpu.memory_space<vmem>>, %arg5: memref<64x512xbf16, #tpu.memory_space<vmem>>, %arg6: memref<1x512xf32, #tpu.memory_space<vmem>>, %arg7: memref<512x512xbf16, #tpu.memory_space<vmem>>, %arg8: memref<1x512xf32, #tpu.memory_space<vmem>>, %arg9: memref<512x128xbf16, #tpu.memory_space<vmem>>, %arg10: memref<1x128xf32, #tpu.memory_space<vmem>>, %arg11: memref<1x8x128xf32, #tpu.memory_space<vmem>>) attributes {dimension_semantics = [#tpu.dimension_semantics<parallel>, #tpu.dimension_semantics<parallel>], iteration_bounds = array<i64: 2, 2>, scalar_prefetch = 0 : i64, scratch_operands = 0 : i64, tpu.core_type = #tpu.core_type<tc>, window_params = [{transform_indices = @transform_0, window_bounds = array<i64: 8, 64>}, {transform_indices = @transform_1, window_bounds = array<i64: 1, 8, 64>}, {pipeline_mode = #tpu.pipeline_mode<synchronous>, transform_indices = @transform_2, window_bounds = array<i64: 64, 512>}, {pipeline_mode = #tpu.pipeline_mode<synchronous>, transform_indices = @transform_3, window_bounds = array<i64: 64, 512>}, {pipeline_mode = #tpu.pipeline_mode<synchronous>, transform_indices = @transform_4, window_bounds = array<i64: 1, 512>}, {pipeline_mode = #tpu.pipeline_mode<synchronous>, transform_indices = @transform_5, window_bounds = array<i64: 512, 512>}, {pipeline_mode = #tpu.pipeline_mode<synchronous>, transform_indices = @transform_6, window_bounds = array<i64: 1, 512>}, {pipeline_mode = #tpu.pipeline_mode<synchronous>, transform_indices = @transform_7, window_bounds = array<i64: 512, 128>}, {pipeline_mode = #tpu.pipeline_mode<synchronous>, transform_indices = @transform_8, window_bounds = array<i64: 1, 128>}, {transform_indices = @transform_9, window_bounds = array<i64: 1, 8, 128>}]} {
    %c0 = arith.constant 0 : index
    %c0_0 = arith.constant 0 : index
    %0 = vector.load %arg2[%c0, %c0_0] : memref<8x64xbf16, #tpu.memory_space<vmem>>, vector<8x64xbf16>
    %c0_1 = arith.constant 0 : index
    %c0_2 = arith.constant 0 : index
    %1 = vector.load %arg4[%c0_1, %c0_2] : memref<64x512xbf16, #tpu.memory_space<vmem>>, vector<64x512xbf16>
    %cst = arith.constant dense<0.000000e+00> : vector<8x512xf32>
    %2 = tpu.matmul %0, %1, %cst {dimension_numbers = #tpu.dot_dimension_numbers<[1], [0], [0], [1], [0, 0, 1, 1], [], []>} : vector<8x64xbf16>, vector<64x512xbf16>, vector<8x512xf32> -> vector<8x512xf32>
    %c0_3 = arith.constant 0 : index
    %c0_4 = arith.constant 0 : index
    %c0_5 = arith.constant 0 : index
    %3 = vector.load %arg3[%c0_3, %c0_4, %c0_5] : memref<1x8x64xbf16, #tpu.memory_space<vmem>>, vector<1x8x64xbf16>
    %4 = vector.shape_cast %3 : vector<1x8x64xbf16> to vector<8x64xbf16>
    %c0_6 = arith.constant 0 : index
    %c0_7 = arith.constant 0 : index
    %5 = vector.load %arg5[%c0_6, %c0_7] : memref<64x512xbf16, #tpu.memory_space<vmem>>, vector<64x512xbf16>
    %cst_8 = arith.constant dense<0.000000e+00> : vector<8x512xf32>
    %6 = tpu.matmul %4, %5, %cst_8 {dimension_numbers = #tpu.dot_dimension_numbers<[1], [0], [0], [1], [0, 0, 1, 1], [], []>} : vector<8x64xbf16>, vector<64x512xbf16>, vector<8x512xf32> -> vector<8x512xf32>
    %7 = arith.addf %2, %6 : vector<8x512xf32>
    %c0_9 = arith.constant 0 : index
    %c0_10 = arith.constant 0 : index
    %8 = vector.load %arg6[%c0_9, %c0_10] : memref<1x512xf32, #tpu.memory_space<vmem>>, vector<1x512xf32>
    %9 = vector.broadcast %8 : vector<1x512xf32> to vector<8x512xf32>
    %10 = arith.addf %7, %9 : vector<8x512xf32>
    %cst_11 = arith.constant 5.000000e-01 : f32
    %11 = vector.broadcast %cst_11 : f32 to vector<8x512xf32>
    %12 = arith.mulf %10, %11 : vector<8x512xf32>
    %cst_12 = arith.constant 5.000000e-01 : f32
    %13 = vector.broadcast %cst_12 : f32 to vector<8x512xf32>
    %14 = arith.mulf %10, %13 : vector<8x512xf32>
    %15 = math.tanh %14 : vector<8x512xf32>
    %cst_13 = arith.constant 1.000000e+00 : f32
    %16 = vector.broadcast %cst_13 : f32 to vector<8x512xf32>
    %17 = arith.addf %16, %15 : vector<8x512xf32>
    %18 = arith.mulf %12, %17 : vector<8x512xf32>
    %19 = arith.truncf %18 : vector<8x512xf32> to vector<8x512xbf16>
    %c0_14 = arith.constant 0 : index
    %c0_15 = arith.constant 0 : index
    %20 = vector.load %arg7[%c0_14, %c0_15] : memref<512x512xbf16, #tpu.memory_space<vmem>>, vector<512x512xbf16>
    %cst_16 = arith.constant dense<0.000000e+00> : vector<8x512xf32>
    %21 = tpu.matmul %19, %20, %cst_16 {dimension_numbers = #tpu.dot_dimension_numbers<[1], [0], [0], [1], [0, 0, 1, 1], [], []>} : vector<8x512xbf16>, vector<512x512xbf16>, vector<8x512xf32> -> vector<8x512xf32>
    %c0_17 = arith.constant 0 : index
    %c0_18 = arith.constant 0 : index
    %22 = vector.load %arg8[%c0_17, %c0_18] : memref<1x512xf32, #tpu.memory_space<vmem>>, vector<1x512xf32>
    %23 = vector.broadcast %22 : vector<1x512xf32> to vector<8x512xf32>
    %24 = arith.addf %21, %23 : vector<8x512xf32>
    %cst_19 = arith.constant 5.000000e-01 : f32
    %25 = vector.broadcast %cst_19 : f32 to vector<8x512xf32>
    %26 = arith.mulf %24, %25 : vector<8x512xf32>
    %cst_20 = arith.constant 5.000000e-01 : f32
    %27 = vector.broadcast %cst_20 : f32 to vector<8x512xf32>
    %28 = arith.mulf %24, %27 : vector<8x512xf32>
    %29 = math.tanh %28 : vector<8x512xf32>
    %cst_21 = arith.constant 1.000000e+00 : f32
    %30 = vector.broadcast %cst_21 : f32 to vector<8x512xf32>
    %31 = arith.addf %30, %29 : vector<8x512xf32>
    %32 = arith.mulf %26, %31 : vector<8x512xf32>
    %33 = arith.truncf %32 : vector<8x512xf32> to vector<8x512xbf16>
    %c0_22 = arith.constant 0 : index
    %c0_23 = arith.constant 0 : index
    %34 = vector.load %arg9[%c0_22, %c0_23] : memref<512x128xbf16, #tpu.memory_space<vmem>>, vector<512x128xbf16>
    %cst_24 = arith.constant dense<0.000000e+00> : vector<8x128xf32>
    %35 = tpu.matmul %33, %34, %cst_24 {dimension_numbers = #tpu.dot_dimension_numbers<[1], [0], [0], [1], [0, 0, 1, 1], [], []>} : vector<8x512xbf16>, vector<512x128xbf16>, vector<8x128xf32> -> vector<8x128xf32>
    %c0_25 = arith.constant 0 : index
    %c0_26 = arith.constant 0 : index
    %36 = vector.load %arg10[%c0_25, %c0_26] : memref<1x128xf32, #tpu.memory_space<vmem>>, vector<1x128xf32>
    %37 = vector.broadcast %36 : vector<1x128xf32> to vector<8x128xf32>
    %38 = arith.addf %35, %37 : vector<8x128xf32>
    %c0_27 = arith.constant 0 : index
    %c0_28 = arith.constant 0 : index
    %c0_29 = arith.constant 0 : index
    %39 = vector.load %arg11[%c0_27, %c0_28, %c0_29] : memref<1x8x128xf32, #tpu.memory_space<vmem>>, vector<1x8x128xf32>
    %40 = vector.shape_cast %39 : vector<1x8x128xf32> to vector<8x128xf32>
    %41 = vector.shape_cast %38 : vector<8x128xf32> to vector<1x8x128xf32>
    tpu.vector_store %arg11[%c0_27, %c0_28, %c0_29], %41 {strides = array<i32>} : memref<1x8x128xf32, #tpu.memory_space<vmem>>, vector<1x8x128xf32>,
    return
  }
  func.func @transform_0(%arg0: i32, %arg1: i32) -> (i32, i32) {
    %c0_i32 = arith.constant 0 : i32
    %c0_i32_0 = arith.constant 0 : i32
    return %arg0, %c0_i32 : i32, i32
  }
  func.func @transform_1(%arg0: i32, %arg1: i32) -> (i32, i32, i32) {
    %c0_i32 = arith.constant 0 : i32
    %c0_i32_0 = arith.constant 0 : i32
    return %arg1, %arg0, %c0_i32 : i32, i32, i32
  }
  func.func @transform_2(%arg0: i32, %arg1: i32) -> (i32, i32) {
    %c0_i32 = arith.constant 0 : i32
    %c0_i32_0 = arith.constant 0 : i32
    %c0_i32_1 = arith.constant 0 : i32
    return %c0_i32, %c0_i32_0 : i32, i32
  }
  func.func @transform_3(%arg0: i32, %arg1: i32) -> (i32, i32) {
    %c0_i32 = arith.constant 0 : i32
    %c0_i32_0 = arith.constant 0 : i32
    %c0_i32_1 = arith.constant 0 : i32
    return %c0_i32, %c0_i32_0 : i32, i32
  }
  func.func @transform_4(%arg0: i32, %arg1: i32) -> (i32, i32) {
    %c0_i32 = arith.constant 0 : i32
    %c0_i32_0 = arith.constant 0 : i32
    %c0_i32_1 = arith.constant 0 : i32
    return %c0_i32, %c0_i32_0 : i32, i32
  }
  func.func @transform_5(%arg0: i32, %arg1: i32) -> (i32, i32) {
    %c0_i32 = arith.constant 0 : i32
    %c0_i32_0 = arith.constant 0 : i32
    %c0_i32_1 = arith.constant 0 : i32
    return %c0_i32, %c0_i32_0 : i32, i32
  }
  func.func @transform_6(%arg0: i32, %arg1: i32) -> (i32, i32) {
    %c0_i32 = arith.constant 0 : i32
    %c0_i32_0 = arith.constant 0 : i32
    %c0_i32_1 = arith.constant 0 : i32
    return %c0_i32, %c0_i32_0 : i32, i32
  }
  func.func @transform_7(%arg0: i32, %arg1: i32) -> (i32, i32) {
    %c0_i32 = arith.constant 0 : i32
    %c0_i32_0 = arith.constant 0 : i32
    %c0_i32_1 = arith.constant 0 : i32
    return %c0_i32, %c0_i32_0 : i32, i32
  }
  func.func @transform_8(%arg0: i32, %arg1: i32) -> (i32, i32) {
    %c0_i32 = arith.constant 0 : i32
    %c0_i32_0 = arith.constant 0 : i32
    %c0_i32_1 = arith.constant 0 : i32
    return %c0_i32, %c0_i32_0 : i32, i32
  }
  func.func @transform_9(%arg0: i32, %arg1: i32) -> (i32, i32, i32) {
    %c0_i32 = arith.constant 0 : i32
    %c0_i32_0 = arith.constant 0 : i32
    return %arg1, %arg0, %c0_i32 : i32, i32, i32
  }
}

</mosaic_0001>

<llo_original>
// kernel: tpu_custom_call.1
$region0: #{tpu_custom_call.1}
  #allocation0 [shape = 'u32[]', space=smem, size = 0x4, offset = 0x4, fixed_abs, tag = 'smem constant byte address 0x4 - core index']
  #allocation1 [shape = 'u32[144,128]{1,0:T(1,128)}', space=vmem, size = 0x12000, scoped, tag = 'internal scratch']
  %s0 = inlined_call_operand.hbm [shape: bf16[16,64], index: 0, kind: input, shape index: {}]
  %s1 = inlined_call_operand.hbm [shape: bf16[2,16,64], index: 1, kind: input, shape index: {}]
  %s2 = inlined_call_operand.hbm [shape: bf16[64,512], index: 2, kind: input, shape index: {}]
  %s3 = inlined_call_operand.hbm [shape: bf16[64,512], index: 3, kind: input, shape index: {}]
  %s4 = inlined_call_operand.vmem [shape: f32[1,512], index: 4, kind: input, shape index: {}]
  %s5 = inlined_call_operand.hbm [shape: bf16[512,512], index: 5, kind: input, shape index: {}]
  %s6 = inlined_call_operand.vmem [shape: f32[1,512], index: 6, kind: input, shape index: {}]
  %s7 = inlined_call_operand.hbm [shape: bf16[512,128], index: 7, kind: input, shape index: {}]
  %s8 = inlined_call_operand.vmem [shape: f32[1,128], index: 8, kind: input, shape index: {}]
  %s9 = inlined_call_operand.hbm [shape: f32[2,16,128], index: 9, kind: output, shape index: {}]
  %s10 = sld [smem:[#allocation0]]
  $region93: #{tpu_custom_call.1} parent=0
    _
  %s12 = ssub.s32 1, %s10
  %s13 = scalar_select 0, %s12, %s10
  $region1: #{tpu_custom_call.1} parent=0
    #allocation2 [shape = 'u8[4096]{0}', space=vmem, size = 0x1000, scoped, tag = 'input window, operand 0']
    #allocation3 [shape = 's32[2]{0}', space=sflag, size = 0x8, scoped, tag = 'scoped memory for tpu_custom_call.1']
    #allocation4 [shape = 's32[2]{0}', space=sflag, size = 0x8, scoped, tag = 'scoped memory for tpu_custom_call.1']
    #allocation5 [shape = 'u8[4096]{0}', space=vmem, size = 0x1000, scoped, tag = 'input window, operand 1']
    #allocation6 [shape = 's32[2]{0}', space=sflag, size = 0x8, scoped, tag = 'scoped memory for tpu_custom_call.1']
    #allocation7 [shape = 'u8[65536]{0}', space=vmem, size = 0x10000, scoped, tag = 'input window, operand 2, single buffered']
    #allocation8 [shape = 'u8[65536]{0}', space=vmem, size = 0x10000, scoped, tag = 'input window, operand 3, single buffered']
    #allocation9 [shape = 's32[1]{0}', space=sflag, size = 0x4, scoped, tag = 'scoped memory for tpu_custom_call.1']
    #allocation10 [shape = 'u8[524288]{0}', space=vmem, size = 0x80000, scoped, tag = 'input window, operand 5, single buffered']
    #allocation11 [shape = 'u8[131072]{0}', space=vmem, size = 0x20000, scoped, tag = 'input window, operand 7, single buffered']
    #allocation12 [shape = 's32[1]{0}', space=sflag, size = 0x4, scoped, tag = 'scoped memory for tpu_custom_call.1']
    #allocation13 [shape = 'u8[8192]{0}', space=vmem, size = 0x2000, scoped, tag = 'output window, operand 0']
    %14 = vsyncpa [#allocation3], 0
    %s15 = scalar_lea.sflag [#allocation3], 1
    %16 = vsyncpa %s15, 0
    %17 = vsyncpa [#allocation6], 0
    %s18 = scalar_lea.sflag [#allocation6], 1
    %19 = vsyncpa %s18, 0
    %20 = vsyncpa [#allocation9], 0
    %21 = vsyncpa [#allocation12], 0
    %22 = vsyncpa [#allocation4], 0
    %s23 = scalar_lea.sflag [#allocation4], 1
    %24 = vsyncpa %s23, 0
    loop: start=0, step=1, limit=6
    $region2: #{tpu_custom_call.1} parent=1 // loop_pre_header
      _
    $region3: #{tpu_custom_call.1} parent=1 // loop_header
      %s26 = sphi 0, %s30
      %p27 = scmp.ge.s32.totalorder %s26, 6
      %s33 = sphi 0, %s45
      %s34 = sphi 0, %s41
      %s35 = sphi 0, %s33
      %s36 = sphi 0, %s34
      %s37 = sphi 0, %s35
      %s38 = sphi 0, %s36
      %s48 = sphi 0, %s50
      %s51 = sphi 0, %s48
      %s52 = sphi 0, %s51
      %s68 = sphi 0, %s52
      %s76 = sphi 0, %s78
      %s79 = sphi 0, %s76
      %s80 = sphi 0, %s79
      %s96 = sphi 0, %s80
      %s100 = sphi 0, %s100
      %s102 = sphi 0, %s100
      %s103 = sphi 0, %s102
      %s117 = sphi 0, %s103
      %s121 = sphi 0, %s121
      %s123 = sphi 0, %s121
      %s124 = sphi 0, %s123
      %s138 = sphi 0, %s124
      %s142 = sphi 0, %s142
      %s144 = sphi 0, %s142
      %s145 = sphi 0, %s144
      %s159 = sphi 0, %s145
      %s163 = sphi 0, %s163
      %s165 = sphi 0, %s163
      %s166 = sphi 0, %s165
      %s180 = sphi 0, %s166
      %s184 = sphi 0, %s184
      %s186 = sphi 0, %s184
      %s187 = sphi 0, %s186
      %s201 = sphi 0, %s187
      %s205 = sphi 0, %s205
      %s207 = sphi 0, %s205
      %s208 = sphi 0, %s207
      %s222 = sphi 0, %s208
      %s226 = sphi 0, %s226
      %s228 = sphi 0, %s226
      %s229 = sphi 0, %s228
      %s243 = sphi 0, %s229
      %s251 = sphi 0, %s253
      %s254 = sphi 0, %s251
      %s255 = sphi 0, %s254
      %s271 = sphi 0, %s255
    $region4: #{tpu_custom_call.1} parent=1 // loop_header_branch
      %29 = sbr.rel (%p27) target = $region8
    $region5: #{tpu_custom_call.1} parent=1 // loop_body
      %s31 = ssub.s32 %s26, 1
      %s32 = ssub.s32 %s26, 2
      %s39 = sadd.s32 1, %s34
      %p40 = scmp.ge.s32.totalorder %s39, 2
      %s41 = scalar_select %p40, 0, %s39
      %s42 = sadd.s32 1, %s33
      %s43 = scalar_select %p40, %s42, %s33
      %p44 = scmp.ge.s32.totalorder %s43, 2
      %s45 = scalar_select %p44, 0, %s43
      %s46 = ssub.s32 %s33, %s45
      %p47 = scmp.eq.s32.totalorder %s46, 0
      %s49 = sadd.s32 %s48, 1
      %s50 = scalar_select %p47, %s48, %s49
      %p53 = pneg %p47
      %p54 = scmp.eq.s32.totalorder %s26, 3
      %p55 = por %p53, %p54
      %p56 = scmp.ne.s32.totalorder %s48, %s51
      %p57 = scmp.eq.s32.totalorder %s26, 0
      %p58 = por %p56, %p57
      %p59 = scmp.ne.s32.totalorder %s48, %s51
      %p60 = scmp.eq.s32.totalorder %s31, 3
      %p61 = por %p59, %p60
      %p62 = scmp.ne.s32.totalorder %s51, %s52
      %p63 = scmp.eq.s32.totalorder %s31, 0
      %p64 = por %p62, %p63
      %p65 = scmp.ne.s32.totalorder %s51, %s52
      %p66 = scmp.eq.s32.totalorder %s32, 3
      %p67 = por %p65, %p66
      %p69 = scmp.ne.s32.totalorder %s52, %s68
      %p70 = scmp.eq.s32.totalorder %s32, 0
      %p71 = por %p69, %p70
      %s72 = ssub.s32 %s34, %s41
      %s73 = ssub.s32 %s33, %s45
      %s74 = sor.u32 %s72, %s73
      %p75 = scmp.eq.s32.totalorder %s74, 0
      %s77 = sadd.s32 %s76, 1
      %s78 = scalar_select %p75, %s76, %s77
      %p81 = pneg %p75
      %p82 = scmp.eq.s32.totalorder %s26, 3
      %p83 = por %p81, %p82
      %p84 = scmp.ne.s32.totalorder %s76, %s79
      %p85 = scmp.eq.s32.totalorder %s26, 0
      %p86 = por %p84, %p85
      %p87 = scmp.ne.s32.totalorder %s76, %s79
      %p88 = scmp.eq.s32.totalorder %s31, 3
      %p89 = por %p87, %p88
      %p90 = scmp.ne.s32.totalorder %s79, %s80
      %p91 = scmp.eq.s32.totalorder %s31, 0
      %p92 = por %p90, %p91
      %p93 = scmp.ne.s32.totalorder %s79, %s80
      %p94 = scmp.eq.s32.totalorder %s32, 3
      %p95 = por %p93, %p94
      %p97 = scmp.ne.s32.totalorder %s80, %s96
      %p98 = scmp.eq.s32.totalorder %s32, 0
      %p99 = por %p97, %p98
      %s101 = sadd.s32 %s100, 1
      %p104 = scmp.eq.s32.totalorder %s26, 3
      %p105 = scmp.ne.s32.totalorder %s100, %s102
      %p106 = scmp.eq.s32.totalorder %s26, 0
      %p107 = por %p105, %p106
      %p108 = scmp.ne.s32.totalorder %s100, %s102
      %p109 = scmp.eq.s32.totalorder %s31, 3
      %p110 = por %p108, %p109
      %p111 = scmp.ne.s32.totalorder %s102, %s103
      %p112 = scmp.eq.s32.totalorder %s31, 0
      %p113 = por %p111, %p112
      %p114 = scmp.ne.s32.totalorder %s102, %s103
      %p115 = scmp.eq.s32.totalorder %s32, 3
      %p116 = por %p114, %p115
      %p118 = scmp.ne.s32.totalorder %s103, %s117
      %p119 = scmp.eq.s32.totalorder %s32, 0
      %p120 = por %p118, %p119
      %s122 = sadd.s32 %s121, 1
      %p125 = scmp.eq.s32.totalorder %s26, 3
      %p126 = scmp.ne.s32.totalorder %s121, %s123
      %p127 = scmp.eq.s32.totalorder %s26, 0
      %p128 = por %p126, %p127
      %p129 = scmp.ne.s32.totalorder %s121, %s123
      %p130 = scmp.eq.s32.totalorder %s31, 3
      %p131 = por %p129, %p130
      %p132 = scmp.ne.s32.totalorder %s123, %s124
      %p133 = scmp.eq.s32.totalorder %s31, 0
      %p134 = por %p132, %p133
      %p135 = scmp.ne.s32.totalorder %s123, %s124
      %p136 = scmp.eq.s32.totalorder %s32, 3
      %p137 = por %p135, %p136
      %p139 = scmp.ne.s32.totalorder %s124, %s138
      %p140 = scmp.eq.s32.totalorder %s32, 0
      %p141 = por %p139, %p140
      %s143 = sadd.s32 %s142, 1
      %p146 = scmp.eq.s32.totalorder %s26, 3
      %p147 = scmp.ne.s32.totalorder %s142, %s144
      %p148 = scmp.eq.s32.totalorder %s26, 0
      %p149 = por %p147, %p148
      %p150 = scmp.ne.s32.totalorder %s142, %s144
      %p151 = scmp.eq.s32.totalorder %s31, 3
      %p152 = por %p150, %p151
      %p153 = scmp.ne.s32.totalorder %s144, %s145
      %p154 = scmp.eq.s32.totalorder %s31, 0
      %p155 = por %p153, %p154
      %p156 = scmp.ne.s32.totalorder %s144, %s145
      %p157 = scmp.eq.s32.totalorder %s32, 3
      %p158 = por %p156, %p157
      %p160 = scmp.ne.s32.totalorder %s145, %s159
      %p161 = scmp.eq.s32.totalorder %s32, 0
      %p162 = por %p160, %p161
      %s164 = sadd.s32 %s163, 1
      %p167 = scmp.eq.s32.totalorder %s26, 3
      %p168 = scmp.ne.s32.totalorder %s163, %s165
      %p169 = scmp.eq.s32.totalorder %s26, 0
      %p170 = por %p168, %p169
      %p171 = scmp.ne.s32.totalorder %s163, %s165
      %p172 = scmp.eq.s32.totalorder %s31, 3
      %p173 = por %p171, %p172
      %p174 = scmp.ne.s32.totalorder %s165, %s166
      %p175 = scmp.eq.s32.totalorder %s31, 0
      %p176 = por %p174, %p175
      %p177 = scmp.ne.s32.totalorder %s165, %s166
      %p178 = scmp.eq.s32.totalorder %s32, 3
      %p179 = por %p177, %p178
      %p181 = scmp.ne.s32.totalorder %s166, %s180
      %p182 = scmp.eq.s32.totalorder %s32, 0
      %p183 = por %p181, %p182
      %s185 = sadd.s32 %s184, 1
      %p188 = scmp.eq.s32.totalorder %s26, 3
      %p189 = scmp.ne.s32.totalorder %s184, %s186
      %p190 = scmp.eq.s32.totalorder %s26, 0
      %p191 = por %p189, %p190
      %p192 = scmp.ne.s32.totalorder %s184, %s186
      %p193 = scmp.eq.s32.totalorder %s31, 3
      %p194 = por %p192, %p193
      %p195 = scmp.ne.s32.totalorder %s186, %s187
      %p196 = scmp.eq.s32.totalorder %s31, 0
      %p197 = por %p195, %p196
      %p198 = scmp.ne.s32.totalorder %s186, %s187
      %p199 = scmp.eq.s32.totalorder %s32, 3
      %p200 = por %p198, %p199
      %p202 = scmp.ne.s32.totalorder %s187, %s201
      %p203 = scmp.eq.s32.totalorder %s32, 0
      %p204 = por %p202, %p203
      %s206 = sadd.s32 %s205, 1
      %p209 = scmp.eq.s32.totalorder %s26, 3
      %p210 = scmp.ne.s32.totalorder %s205, %s207
      %p211 = scmp.eq.s32.totalorder %s26, 0
      %p212 = por %p210, %p211
      %p213 = scmp.ne.s32.totalorder %s205, %s207
      %p214 = scmp.eq.s32.totalorder %s31, 3
      %p215 = por %p213, %p214
      %p216 = scmp.ne.s32.totalorder %s207, %s208
      %p217 = scmp.eq.s32.totalorder %s31, 0
      %p218 = por %p216, %p217
      %p219 = scmp.ne.s32.totalorder %s207, %s208
      %p220 = scmp.eq.s32.totalorder %s32, 3
      %p221 = por %p219, %p220
      %p223 = scmp.ne.s32.totalorder %s208, %s222
      %p224 = scmp.eq.s32.totalorder %s32, 0
      %p225 = por %p223, %p224
      %s227 = sadd.s32 %s226, 1
      %p230 = scmp.eq.s32.totalorder %s26, 3
      %p231 = scmp.ne.s32.totalorder %s226, %s228
      %p232 = scmp.eq.s32.totalorder %s26, 0
      %p233 = por %p231, %p232
      %p234 = scmp.ne.s32.totalorder %s226, %s228
      %p235 = scmp.eq.s32.totalorder %s31, 3
      %p236 = por %p234, %p235
      %p237 = scmp.ne.s32.totalorder %s228, %s229
      %p238 = scmp.eq.s32.totalorder %s31, 0
      %p239 = por %p237, %p238
      %p240 = scmp.ne.s32.totalorder %s228, %s229
      %p241 = scmp.eq.s32.totalorder %s32, 3
      %p242 = por %p240, %p241
      %p244 = scmp.ne.s32.totalorder %s229, %s243
      %p245 = scmp.eq.s32.totalorder %s32, 0
      %p246 = por %p244, %p245
      %s247 = ssub.s32 %s34, %s41
      %s248 = ssub.s32 %s33, %s45
      %s249 = sor.u32 %s247, %s248
      %p250 = scmp.eq.s32.totalorder %s249, 0
      %s252 = sadd.s32 %s251, 1
      %s253 = scalar_select %p250, %s251, %s252
      %p256 = pneg %p250
      %p257 = scmp.eq.s32.totalorder %s26, 3
      %p258 = por %p256, %p257
      %p259 = scmp.ne.s32.totalorder %s251, %s254
      %p260 = scmp.eq.s32.totalorder %s26, 0
      %p261 = por %p259, %p260
      %p262 = scmp.ne.s32.totalorder %s251, %s254
      %p263 = scmp.eq.s32.totalorder %s31, 3
      %p264 = por %p262, %p263
      %p265 = scmp.ne.s32.totalorder %s254, %s255
      %p266 = scmp.eq.s32.totalorder %s31, 0
      %p267 = por %p265, %p266
      %p268 = scmp.ne.s32.totalorder %s254, %s255
      %p269 = scmp.eq.s32.totalorder %s32, 3
      %p270 = por %p268, %p269
      %p272 = scmp.ne.s32.totalorder %s255, %s271
      %p273 = scmp.eq.s32.totalorder %s32, 0
      %p274 = por %p272, %p273
      %p275 = scmp.le.s32.totalorder 1, %s26
      %p276 = scmp.lt.s32.totalorder %s26, 5
      %p277 = pnand %p275, %p276
      %p278 = pneg %p277
      // Predicated region
      $region9: #{tpu_custom_call.1} parent=5 // pred_check
        _
      $region10: #{tpu_custom_call.1} parent=5 // pred_check_branch
        %280 = sbr.rel (%p277) target = $region12
      $region11: #{tpu_custom_call.1} parent=5 // pred_region
        %s281 = ssub.s32 %s26, 1
        // Predicated region
        $region13: #{tpu_custom_call.1} parent=11 // pred_check
          %p282 = pneg %p113
        $region14: #{tpu_custom_call.1} parent=11 // pred_check_branch
          %284 = sbr.rel (%p282) target = $region16
        $region15: #{tpu_custom_call.1} parent=11 // pred_region
          %s286 = ssub.s32 2048, 2048
          %287 = vsyncadd [#allocation6], %s286
          %s288 = sshll.u32 [#allocation7], 4
          %s289 = int_to_ptr.vmem [resolvable:$true] %s288
          %294 = dma.hbm_to_vmem [thread:$0]  %s2, 2048, %s289, [#allocation6], 256, 256, 16
        $region16: #{tpu_custom_call.1} parent=11 // pred_fallthru
          _
        // Predicated region
        $region17: #{tpu_custom_call.1} parent=11 // pred_check
          %p295 = pneg %p134
        $region18: #{tpu_custom_call.1} parent=11 // pred_check_branch
          %297 = sbr.rel (%p295) target = $region20
        $region19: #{tpu_custom_call.1} parent=11 // pred_region
          %s299 = ssub.s32 2048, 2048
          %300 = vsyncadd [#allocation9], %s299
          %s301 = sshll.u32 [#allocation8], 4
          %s302 = int_to_ptr.vmem [resolvable:$true] %s301
          %307 = dma.hbm_to_vmem [thread:$0]  %s3, 2048, %s302, [#allocation9], 256, 256, 16
        $region20: #{tpu_custom_call.1} parent=11 // pred_fallthru
          _
        // Predicated region
        $region21: #{tpu_custom_call.1} parent=11 // pred_check
          %p308 = pneg %p155
        $region22: #{tpu_custom_call.1} parent=11 // pred_check_branch
          %310 = sbr.rel (%p308) target = $region24
        $region23: #{tpu_custom_call.1} parent=11 // pred_region
          _
        $region24: #{tpu_custom_call.1} parent=11 // pred_fallthru
          _
        // Predicated region
        $region25: #{tpu_custom_call.1} parent=11 // pred_check
          %p311 = pneg %p176
        $region26: #{tpu_custom_call.1} parent=11 // pred_check_branch
          %313 = sbr.rel (%p311) target = $region28
        $region27: #{tpu_custom_call.1} parent=11 // pred_region
          %s315 = ssub.s32 16384, 16384
          %316 = vsyncadd [#allocation9], %s315
          %s317 = sshll.u32 [#allocation10], 4
          %s318 = int_to_ptr.vmem [resolvable:$true] %s317
          %323 = dma.hbm_to_vmem [thread:$0]  %s5, 16384, %s318, [#allocation9], 256, 256, 16
        $region28: #{tpu_custom_call.1} parent=11 // pred_fallthru
          _
        // Predicated region
        $region29: #{tpu_custom_call.1} parent=11 // pred_check
          %p324 = pneg %p197
        $region30: #{tpu_custom_call.1} parent=11 // pred_check_branch
          %326 = sbr.rel (%p324) target = $region32
        $region31: #{tpu_custom_call.1} parent=11 // pred_region
          _
        $region32: #{tpu_custom_call.1} parent=11 // pred_fallthru
          _
        // Predicated region
        $region33: #{tpu_custom_call.1} parent=11 // pred_check
          %p327 = pneg %p218
        $region34: #{tpu_custom_call.1} parent=11 // pred_check_branch
          %329 = sbr.rel (%p327) target = $region36
        $region35: #{tpu_custom_call.1} parent=11 // pred_region
          %s331 = ssub.s32 4096, 4096
          %332 = vsyncadd [#allocation12], %s331
          %s333 = sshll.u32 [#allocation11], 4
          %s334 = int_to_ptr.vmem [resolvable:$true] %s333
          %339 = dma.hbm_to_vmem [thread:$0]  %s7, 4096, %s334, [#allocation12], 64, 64, 4
        $region36: #{tpu_custom_call.1} parent=11 // pred_fallthru
          _
        // Predicated region
        $region37: #{tpu_custom_call.1} parent=11 // pred_check
          %p340 = pneg %p239
        $region38: #{tpu_custom_call.1} parent=11 // pred_check_branch
          %342 = sbr.rel (%p340) target = $region40
        $region39: #{tpu_custom_call.1} parent=11 // pred_region
          _
        $region40: #{tpu_custom_call.1} parent=11 // pred_fallthru
          _
      $region12: #{tpu_custom_call.1} parent=5 // pred_fallthru
        _
      %p343 = scmp.lt.s32.totalorder %s26, 4
      // Predicated region
      $region41: #{tpu_custom_call.1} parent=5 // pred_check
        %p344 = pneg %p343
      $region42: #{tpu_custom_call.1} parent=5 // pred_check_branch
        %346 = sbr.rel (%p344) target = $region44
      $region43: #{tpu_custom_call.1} parent=5 // pred_region
        // Predicated region
        $region45: #{tpu_custom_call.1} parent=43 // pred_check
          %p347 = pneg %p58
        $region46: #{tpu_custom_call.1} parent=43 // pred_check_branch
          %349 = sbr.rel (%p347) target = $region48
        $region47: #{tpu_custom_call.1} parent=43 // pred_region
          %s350 = sand.u32 %s48, 1
          %s351 = scalar_lea.sflag [#allocation3], %s350
          %s352 = sand.u32 %s48, 1
          %s353 = smul.addr %s352, 4
          %s354 = scalar_lea.vmem [#allocation2], %s353
          %s356 = ssub.s32 64, 64
          %357 = vsyncadd %s351, %s356
          %s358 = smul.addr %s33, 64
          %s359 = scalar_lea.hbm %s0, %s358
          %s361 = sshll.u32 %s354, 4
          %s362 = int_to_ptr.vmem [resolvable:$true] %s361
          %364 = dma.hbm_to_vmem [thread:$0]  %s359, 64, %s362, %s351
        $region48: #{tpu_custom_call.1} parent=43 // pred_fallthru
          _
        // Predicated region
        $region49: #{tpu_custom_call.1} parent=43 // pred_check
          %p365 = pneg %p86
        $region50: #{tpu_custom_call.1} parent=43 // pred_check_branch
          %367 = sbr.rel (%p365) target = $region52
        $region51: #{tpu_custom_call.1} parent=43 // pred_region
          %s368 = sand.u32 %s26, 1
          %s369 = scalar_lea.sflag [#allocation6], %s368
          %s370 = sand.u32 %s76, 1
          %s371 = smul.addr %s370, 4
          %s372 = scalar_lea.vmem [#allocation5], %s371
          %s374 = ssub.s32 64, 64
          %375 = vsyncadd %s369, %s374
          %s376 = smul.addr %s34, 2
          %s377 = sadd.s32 %s33, %s376
          %s378 = smul.addr %s377, 64
          %s379 = scalar_lea.hbm %s1, %s378
          %s381 = sshll.u32 %s372, 4
          %s382 = int_to_ptr.vmem [resolvable:$true] %s381
          %384 = dma.hbm_to_vmem [thread:$0]  %s379, 64, %s382, %s369
        $region52: #{tpu_custom_call.1} parent=43 // pred_fallthru
          _
      $region44: #{tpu_custom_call.1} parent=5 // pred_fallthru
        _
      %p385 = scmp.le.s32.totalorder 1, %s26
      %p386 = scmp.lt.s32.totalorder %s26, 5
      %p387 = pnand %p385, %p386
      %p388 = pneg %p387
      // Predicated region
      $region53: #{tpu_custom_call.1} parent=5 // pred_check
        _
      $region54: #{tpu_custom_call.1} parent=5 // pred_check_branch
        %390 = sbr.rel (%p387) target = $region56
      $region55: #{tpu_custom_call.1} parent=5 // pred_region
        %s391 = ssub.s32 %s26, 1
        %s392 = sand.u32 %s51, 1
        %s393 = scalar_lea.sflag [#allocation3], %s392
        %s394 = sand.u32 %s51, 1
        %s395 = smul.addr %s394, 4
        %s396 = scalar_lea.vmem [#allocation2], %s395
        // Predicated region
        $region57: #{tpu_custom_call.1} parent=55 // pred_check
          %p397 = pneg %p64
        $region58: #{tpu_custom_call.1} parent=55 // pred_check_branch
          %399 = sbr.rel (%p397) target = $region60
        $region59: #{tpu_custom_call.1} parent=55 // pred_region
          %400 = dma.done %s393, 64
        $region60: #{tpu_custom_call.1} parent=55 // pred_fallthru
          _
        %s401 = sand.u32 %s31, 1
        %s402 = scalar_lea.sflag [#allocation6], %s401
        %s403 = sand.u32 %s79, 1
        %s404 = smul.addr %s403, 4
        %s405 = scalar_lea.vmem [#allocation5], %s404
        // Predicated region
        $region61: #{tpu_custom_call.1} parent=55 // pred_check
          %p406 = pneg %p92
        $region62: #{tpu_custom_call.1} parent=55 // pred_check_branch
          %408 = sbr.rel (%p406) target = $region64
        $region63: #{tpu_custom_call.1} parent=55 // pred_region
          %409 = dma.done %s402, 64
        $region64: #{tpu_custom_call.1} parent=55 // pred_fallthru
          _
        // Predicated region
        $region65: #{tpu_custom_call.1} parent=55 // pred_check
          %p410 = pneg %p113
        $region66: #{tpu_custom_call.1} parent=55 // pred_check_branch
          %412 = sbr.rel (%p410) target = $region68
        $region67: #{tpu_custom_call.1} parent=55 // pred_region
          %413 = dma.done [#allocation6], 2048
        $region68: #{tpu_custom_call.1} parent=55 // pred_fallthru
          _
        // Predicated region
        $region69: #{tpu_custom_call.1} parent=55 // pred_check
          %p414 = pneg %p134
        $region70: #{tpu_custom_call.1} parent=55 // pred_check_branch
          %416 = sbr.rel (%p414) target = $region72
        $region71: #{tpu_custom_call.1} parent=55 // pred_region
          %417 = dma.done [#allocation9], 2048
        $region72: #{tpu_custom_call.1} parent=55 // pred_fallthru
          _
        // Predicated region
        $region73: #{tpu_custom_call.1} parent=55 // pred_check
          %p418 = pneg %p176
        $region74: #{tpu_custom_call.1} parent=55 // pred_check_branch
          %420 = sbr.rel (%p418) target = $region76
        $region75: #{tpu_custom_call.1} parent=55 // pred_region
          %421 = dma.done [#allocation9], 16384
        $region76: #{tpu_custom_call.1} parent=55 // pred_fallthru
          _
        // Predicated region
        $region77: #{tpu_custom_call.1} parent=55 // pred_check
          %p422 = pneg %p218
        $region78: #{tpu_custom_call.1} parent=55 // pred_check_branch
          %424 = sbr.rel (%p422) target = $region80
        $region79: #{tpu_custom_call.1} parent=55 // pred_region
          %425 = dma.done [#allocation12], 4096
        $region80: #{tpu_custom_call.1} parent=55 // pred_fallthru
          _
        %s426 = sand.u32 %s51, 1
        %s427 = scalar_lea.sflag [#allocation3], %s426
        %s428 = sand.u32 %s51, 1
        %s429 = smul.addr %s428, 4
        %s430 = scalar_lea.vmem [#allocation2], %s429
        %p431 = pneg %p64
        %p432 = pneg %p61
        %s433 = sand.u32 %s31, 1
        %s434 = scalar_lea.sflag [#allocation6], %s433
        %s435 = sand.u32 %s79, 1
        %s436 = smul.addr %s435, 4
        %s437 = scalar_lea.vmem [#allocation5], %s436
        %p438 = pneg %p92
        %p439 = pneg %p89
        %p440 = pneg %p113
        %p441 = pneg %p110
        %p442 = pneg %p134
        %p443 = pneg %p131
        %p444 = pneg %p155
        %p445 = pneg %p152
        %p446 = pneg %p176
        %p447 = pneg %p173
        %p448 = pneg %p197
        %p449 = pneg %p194
        %p450 = pneg %p218
        %p451 = pneg %p215
        %p452 = pneg %p239
        %p453 = pneg %p236
        %p454 = pneg %p267
        %p455 = pneg %p264
        %s456 = sand.u32 %s254, 1
        %s457 = scalar_lea.sflag [#allocation4], %s456
        %s458 = sand.u32 %s254, 1
        %s459 = smul.addr %s458, 8
        %s460 = scalar_lea.vmem [#allocation13], %s459
        %v462 = vld [vmem:[%s396] sm:$0xf]
        %v463 = vld [vmem:[#allocation7] sm:$0xff]
        %v464 = vld [vmem:[#allocation7 + $0x8] sm:$0xff]
        %v465 = vld [vmem:[#allocation7 + $0x10] sm:$0xff]
        %v466 = vld [vmem:[#allocation7 + $0x18] sm:$0xff]
        %v467 = vld [vmem:[#allocation7 + $0x20] sm:$0xff]
        %v468 = vld [vmem:[#allocation7 + $0x28] sm:$0xff]
        %v469 = vld [vmem:[#allocation7 + $0x30] sm:$0xff]
        %v470 = vld [vmem:[#allocation7 + $0x38] sm:$0xff]
        %v471 = vld [vmem:[#allocation7 + $0x40] sm:$0xff]
        %v472 = vld [vmem:[#allocation7 + $0x48] sm:$0xff]
        %v473 = vld [vmem:[#allocation7 + $0x50] sm:$0xff]
        %v474 = vld [vmem:[#allocation7 + $0x58] sm:$0xff]
        %v475 = vld [vmem:[#allocation7 + $0x60] sm:$0xff]
        %v476 = vld [vmem:[#allocation7 + $0x68] sm:$0xff]
        %v477 = vld [vmem:[#allocation7 + $0x70] sm:$0xff]
        %v478 = vld [vmem:[#allocation7 + $0x78] sm:$0xff]
        %v479 = vld [vmem:[%s405] sm:$0xf]
        %v480 = vld [vmem:[#allocation8] sm:$0xff]
        %v481 = vld [vmem:[#allocation8 + $0x8] sm:$0xff]
        %v482 = vld [vmem:[#allocation8 + $0x10] sm:$0xff]
        %v483 = vld [vmem:[#allocation8 + $0x18] sm:$0xff]
        %v484 = vld [vmem:[#allocation8 + $0x20] sm:$0xff]
        %v485 = vld [vmem:[#allocation8 + $0x28] sm:$0xff]
        %v486 = vld [vmem:[#allocation8 + $0x30] sm:$0xff]
        %v487 = vld [vmem:[#allocation8 + $0x38] sm:$0xff]
        %v488 = vld [vmem:[#allocation8 + $0x40] sm:$0xff]
        %v489 = vld [vmem:[#allocation8 + $0x48] sm:$0xff]
        %v490 = vld [vmem:[#allocation8 + $0x50] sm:$0xff]
        %v491 = vld [vmem:[#allocation8 + $0x58] sm:$0xff]
        %v492 = vld [vmem:[#allocation8 + $0x60] sm:$0xff]
        %v493 = vld [vmem:[#allocation8 + $0x68] sm:$0xff]
        %v494 = vld [vmem:[#allocation8 + $0x70] sm:$0xff]
        %v495 = vld [vmem:[#allocation8 + $0x78] sm:$0xff]
        %v512 = vunpack.c.l.b16 %v480
        %v513 = vunpack.c.h.b16 %v480
        %v514 = vunpack.c.l.b16 %v481
        %v515 = vunpack.c.h.b16 %v481
        %v516 = vunpack.c.l.b16 %v482
        %v517 = vunpack.c.h.b16 %v482
        %v518 = vunpack.c.l.b16 %v483
        %v519 = vunpack.c.h.b16 %v483
        %v520 = vunpack.c.l.b16 %v484
        %v521 = vunpack.c.h.b16 %v484
        %v522 = vunpack.c.l.b16 %v485
        %v523 = vunpack.c.h.b16 %v485
        %v524 = vunpack.c.l.b16 %v486
        %v525 = vunpack.c.h.b16 %v486
        %v526 = vunpack.c.l.b16 %v487
        %v527 = vunpack.c.h.b16 %v487
        %v528 = vunpack.c.l.b16 %v488
        %v529 = vunpack.c.h.b16 %v488
        %v530 = vunpack.c.l.b16 %v489
        %v531 = vunpack.c.h.b16 %v489
        %v532 = vunpack.c.l.b16 %v490
        %v533 = vunpack.c.h.b16 %v490
        %v534 = vunpack.c.l.b16 %v491
        %v535 = vunpack.c.h.b16 %v491
        %v536 = vunpack.c.l.b16 %v492
        %v537 = vunpack.c.h.b16 %v492
        %v538 = vunpack.c.l.b16 %v493
        %v539 = vunpack.c.h.b16 %v493
        %v540 = vunpack.c.l.b16 %v494
        %v541 = vunpack.c.h.b16 %v494
        %v542 = vunpack.c.l.b16 %v495
        %v543 = vunpack.c.h.b16 %v495
        %v544 = vpack.c.b16 %v516, %v512
        %v545 = vpack.c.b16 %v517, %v513
        %v546 = vpack.c.b16 %v518, %v514
        %v547 = vpack.c.b16 %v519, %v515
        %v548 = vpack.c.b16 %v524, %v520
        %v549 = vpack.c.b16 %v525, %v521
        %v550 = vpack.c.b16 %v526, %v522
        %v551 = vpack.c.b16 %v527, %v523
        %v552 = vpack.c.b16 %v532, %v528
        %v553 = vpack.c.b16 %v533, %v529
        %v554 = vpack.c.b16 %v534, %v530
        %v555 = vpack.c.b16 %v535, %v531
        %v556 = vpack.c.b16 %v540, %v536
        %v557 = vpack.c.b16 %v541, %v537
        %v558 = vpack.c.b16 %v542, %v538
        %v559 = vpack.c.b16 %v543, %v539
        %vm576 = vcmask 523264
        %v578 = vsel %vm576, %v479, 0
        %580 = vmatprep.subr.bf16.mxu0 %v545
        %581 = vmatpush1.bf16.msra.mxu0 %v544
        %582 = vmatprep.subr.bf16.mxu0 %v549
        %583 = vmatpush1.bf16.msra.mxu0 %v548
        %584 = vmatprep.subr.bf16.mxu0 %v553
        %585 = vmatpush1.bf16.msra.mxu0 %v552
        %586 = vmatprep.subr.bf16.mxu0 %v557
        %587 = vmatpush1.bf16.msra.mxu0 %v556
        %588 = vmatprep.subr.bf16.mxu0 0
        %589 = vmatpush1.bf16.msra.mxu0 0
        %590 = vmatprep.subr.bf16.mxu0 0
        %591 = vmatpush1.bf16.msra.mxu0 0
        %592 = vmatprep.subr.bf16.mxu0 0
        %593 = vmatpush1.bf16.msra.mxu0 0
        %594 = vmatprep.subr.bf16.mxu0 0
        %595 = vmatpush1.bf16.msra.mxu0 0
        %596 = vmatprep.subr.bf16.mxu0 0
        %597 = vmatpush1.bf16.msra.mxu0 0
        %598 = vmatprep.subr.bf16.mxu0 0
        %599 = vmatpush1.bf16.msra.mxu0 0
        %600 = vmatprep.subr.bf16.mxu0 0
        %601 = vmatpush1.bf16.msra.mxu0 0
        %602 = vmatprep.subr.bf16.mxu0 0
        %603 = vmatpush1.bf16.msra.mxu0 0
        %604 = vmatprep.subr.bf16.mxu0 0
        %605 = vmatpush1.bf16.msra.mxu0 0
        %606 = vmatprep.subr.bf16.mxu0 0
        %607 = vmatpush1.bf16.msra.mxu0 0
        %608 = vmatprep.subr.bf16.mxu0 0
        %609 = vmatpush1.bf16.msra.mxu0 0
        %610 = vmatprep.subr.bf16.mxu0 0
        %611 = vmatpush1.bf16.msra.mxu0 0
        %612 = vmatprep.mubr.bf16.mxu0 0
        %613 = vmatmul.mubr.bf16.gmra.mrb[0].mxu0 %v578
        %v614 = vpop.f32.mrb[0].mxu0
        %v615 = vadd.f32 0.0, %v614
        %v616 = vpop.f32.mrb[0].mxu0
        %v617 = vadd.f32 0.0, %v616
        %v618 = vpop.f32.mrb[0].mxu0
        %v619 = vpop.f32.mrb[0].mxu0
        %620 = vdwg.mxu0
        %621 = vmatprep.subr.bf16.mxu0 %v547
        %622 = vmatpush1.bf16.msra.mxu0 %v546
        %623 = vmatprep.subr.bf16.mxu0 %v551
        %624 = vmatpush1.bf16.msra.mxu0 %v550
        %625 = vmatprep.subr.bf16.mxu0 %v555
        %626 = vmatpush1.bf16.msra.mxu0 %v554
        %627 = vmatprep.subr.bf16.mxu0 %v559
        %628 = vmatpush1.bf16.msra.mxu0 %v558
        %629 = vmatprep.subr.bf16.mxu0 0
        %630 = vmatpush1.bf16.msra.mxu0 0
        %631 = vmatprep.subr.bf16.mxu0 0
        %632 = vmatpush1.bf16.msra.mxu0 0
        %633 = vmatprep.subr.bf16.mxu0 0
        %634 = vmatpush1.bf16.msra.mxu0 0
        %635 = vmatprep.subr.bf16.mxu0 0
        %636 = vmatpush1.bf16.msra.mxu0 0
        %637 = vmatprep.subr.bf16.mxu0 0
        %638 = vmatpush1.bf16.msra.mxu0 0
        %639 = vmatprep.subr.bf16.mxu0 0
        %640 = vmatpush1.bf16.msra.mxu0 0
        %641 = vmatprep.subr.bf16.mxu0 0
        %642 = vmatpush1.bf16.msra.mxu0 0
        %643 = vmatprep.subr.bf16.mxu0 0
        %644 = vmatpush1.bf16.msra.mxu0 0
        %645 = vmatprep.subr.bf16.mxu0 0
        %646 = vmatpush1.bf16.msra.mxu0 0
        %647 = vmatprep.subr.bf16.mxu0 0
        %648 = vmatpush1.bf16.msra.mxu0 0
        %649 = vmatprep.subr.bf16.mxu0 0
        %650 = vmatpush1.bf16.msra.mxu0 0
        %651 = vmatprep.subr.bf16.mxu0 0
        %652 = vmatpush1.bf16.msra.mxu0 0
        %653 = vmatprep.mubr.bf16.mxu0 0
        %654 = vmatmul.mubr.bf16.gmra.mrb[0].mxu0 %v578
        %v655 = vpop.f32.mrb[0].mxu0
        %v656 = vadd.f32 0.0, %v655
        %v657 = vpop.f32.mrb[0].mxu0
        %v658 = vadd.f32 0.0, %v657
        %v659 = vpop.f32.mrb[0].mxu0
        %v660 = vpop.f32.mrb[0].mxu0
        %661 = vdwg.mxu0
        %v678 = vunpack.c.l.b16 %v463
        %v679 = vunpack.c.h.b16 %v463
        %v680 = vunpack.c.l.b16 %v464
        %v681 = vunpack.c.h.b16 %v464
        %v682 = vunpack.c.l.b16 %v465
        %v683 = vunpack.c.h.b16 %v465
        %v684 = vunpack.c.l.b16 %v466
        %v685 = vunpack.c.h.b16 %v466
        %v686 = vunpack.c.l.b16 %v467
        %v687 = vunpack.c.h.b16 %v467
        %v688 = vunpack.c.l.b16 %v468
        %v689 = vunpack.c.h.b16 %v468
        %v690 = vunpack.c.l.b16 %v469
        %v691 = vunpack.c.h.b16 %v469
        %v692 = vunpack.c.l.b16 %v470
        %v693 = vunpack.c.h.b16 %v470
        %v694 = vunpack.c.l.b16 %v471
        %v695 = vunpack.c.h.b16 %v471
        %v696 = vunpack.c.l.b16 %v472
        %v697 = vunpack.c.h.b16 %v472
        %v698 = vunpack.c.l.b16 %v473
        %v699 = vunpack.c.h.b16 %v473
        %v700 = vunpack.c.l.b16 %v474
        %v701 = vunpack.c.h.b16 %v474
        %v702 = vunpack.c.l.b16 %v475
        %v703 = vunpack.c.h.b16 %v475
        %v704 = vunpack.c.l.b16 %v476
        %v705 = vunpack.c.h.b16 %v476
        %v706 = vunpack.c.l.b16 %v477
        %v707 = vunpack.c.h.b16 %v477
        %v708 = vunpack.c.l.b16 %v478
        %v709 = vunpack.c.h.b16 %v478
        %v710 = vpack.c.b16 %v682, %v678
        %v711 = vpack.c.b16 %v683, %v679
        %v712 = vpack.c.b16 %v684, %v680
        %v713 = vpack.c.b16 %v685, %v681
        %v714 = vpack.c.b16 %v690, %v686
        %v715 = vpack.c.b16 %v691, %v687
        %v716 = vpack.c.b16 %v692, %v688
        %v717 = vpack.c.b16 %v693, %v689
        %v718 = vpack.c.b16 %v698, %v694
        %v719 = vpack.c.b16 %v699, %v695
        %v720 = vpack.c.b16 %v700, %v696
        %v721 = vpack.c.b16 %v701, %v697
        %v722 = vpack.c.b16 %v706, %v702
        %v723 = vpack.c.b16 %v707, %v703
        %v724 = vpack.c.b16 %v708, %v704
        %v725 = vpack.c.b16 %v709, %v705
        %v743 = vsel %vm576, %v462, 0
        %745 = vmatprep.subr.bf16.mxu0 %v711
        %746 = vmatpush1.bf16.msra.mxu0 %v710
        %747 = vmatprep.subr.bf16.mxu0 %v715
        %748 = vmatpush1.bf16.msra.mxu0 %v714
        %749 = vmatprep.subr.bf16.mxu0 %v719
        %750 = vmatpush1.bf16.msra.mxu0 %v718
        %751 = vmatprep.subr.bf16.mxu0 %v723
        %752 = vmatpush1.bf16.msra.mxu0 %v722
        %753 = vmatprep.subr.bf16.mxu0 0
        %754 = vmatpush1.bf16.msra.mxu0 0
        %755 = vmatprep.subr.bf16.mxu0 0
        %756 = vmatpush1.bf16.msra.mxu0 0
        %757 = vmatprep.subr.bf16.mxu0 0
        %758 = vmatpush1.bf16.msra.mxu0 0
        %759 = vmatprep.subr.bf16.mxu0 0
        %760 = vmatpush1.bf16.msra.mxu0 0
        %761 = vmatprep.subr.bf16.mxu0 0
        %762 = vmatpush1.bf16.msra.mxu0 0
        %763 = vmatprep.subr.bf16.mxu0 0
        %764 = vmatpush1.bf16.msra.mxu0 0
        %765 = vmatprep.subr.bf16.mxu0 0
        %766 = vmatpush1.bf16.msra.mxu0 0
        %767 = vmatprep.subr.bf16.mxu0 0
        %768 = vmatpush1.bf16.msra.mxu0 0
        %769 = vmatprep.subr.bf16.mxu0 0
        %770 = vmatpush1.bf16.msra.mxu0 0
        %771 = vmatprep.subr.bf16.mxu0 0
        %772 = vmatpush1.bf16.msra.mxu0 0
        %773 = vmatprep.subr.bf16.mxu0 0
        %774 = vmatpush1.bf16.msra.mxu0 0
        %775 = vmatprep.subr.bf16.mxu0 0
        %776 = vmatpush1.bf16.msra.mxu0 0
        %777 = vmatprep.mubr.bf16.mxu0 0
        %778 = vmatmul.mubr.bf16.gmra.mrb[0].mxu0 %v743
        %v779 = vpop.f32.mrb[0].mxu0
        %v780 = vadd.f32 %v615, %v779
        %v781 = vpop.f32.mrb[0].mxu0
        %v782 = vadd.f32 %v617, %v781
        %v783 = vpop.f32.mrb[0].mxu0
        %v784 = vpop.f32.mrb[0].mxu0
        %785 = vdwg.mxu0
        %786 = vmatprep.subr.bf16.mxu0 %v713
        %787 = vmatpush1.bf16.msra.mxu0 %v712
        %788 = vmatprep.subr.bf16.mxu0 %v717
        %789 = vmatpush1.bf16.msra.mxu0 %v716
        %790 = vmatprep.subr.bf16.mxu0 %v721
        %791 = vmatpush1.bf16.msra.mxu0 %v720
        %792 = vmatprep.subr.bf16.mxu0 %v725
        %793 = vmatpush1.bf16.msra.mxu0 %v724
        %794 = vmatprep.subr.bf16.mxu0 0
        %795 = vmatpush1.bf16.msra.mxu0 0
        %796 = vmatprep.subr.bf16.mxu0 0
        %797 = vmatpush1.bf16.msra.mxu0 0
        %798 = vmatprep.subr.bf16.mxu0 0
        %799 = vmatpush1.bf16.msra.mxu0 0
        %800 = vmatprep.subr.bf16.mxu0 0
        %801 = vmatpush1.bf16.msra.mxu0 0
        %802 = vmatprep.subr.bf16.mxu0 0
        %803 = vmatpush1.bf16.msra.mxu0 0
        %804 = vmatprep.subr.bf16.mxu0 0
        %805 = vmatpush1.bf16.msra.mxu0 0
        %806 = vmatprep.subr.bf16.mxu0 0
        %807 = vmatpush1.bf16.msra.mxu0 0
        %808 = vmatprep.subr.bf16.mxu0 0
        %809 = vmatpush1.bf16.msra.mxu0 0
        %810 = vmatprep.subr.bf16.mxu0 0
        %811 = vmatpush1.bf16.msra.mxu0 0
        %812 = vmatprep.subr.bf16.mxu0 0
        %813 = vmatpush1.bf16.msra.mxu0 0
        %814 = vmatprep.subr.bf16.mxu0 0
        %815 = vmatpush1.bf16.msra.mxu0 0
        %816 = vmatprep.subr.bf16.mxu0 0
        %817 = vmatpush1.bf16.msra.mxu0 0
        %818 = vmatprep.mubr.bf16.mxu0 0
        %819 = vmatmul.mubr.bf16.gmra.mrb[0].mxu0 %v743
        %v820 = vpop.f32.mrb[0].mxu0
        %v821 = vadd.f32 %v656, %v820
        %v822 = vpop.f32.mrb[0].mxu0
        %v823 = vadd.f32 %v658, %v822
        %v824 = vpop.f32.mrb[0].mxu0
        %v825 = vpop.f32.mrb[0].mxu0
        %826 = vdwg.mxu0
        %v827 = vld [vmem:[%s4] sm:$0xf]
        %v829 = vlaneseq
        %v830 = vshrl.u32 %v829, 7
        %v831 = vsub.s32 0, %v830
        %v832 = vrot.slane %v827, %v831
        %v833 = vlaneseq
        %v834 = vshrl.u32 %v833, 7
        %v835 = vsub.s32 1, %v834
        %v836 = vrot.slane %v827, %v835
        %v837 = vlaneseq
        %v838 = vshrl.u32 %v837, 7
        %v839 = vsub.s32 2, %v838
        %v840 = vrot.slane %v827, %v839
        %v841 = vlaneseq
        %v842 = vshrl.u32 %v841, 7
        %v843 = vsub.s32 3, %v842
        %v844 = vrot.slane %v827, %v843
        %v849 = vadd.f32 %v780, %v832
        %v850 = vadd.f32 %v782, %v836
        %v851 = vadd.f32 %v821, %v840
        %v852 = vadd.f32 %v823, %v844
        %v853 = vmul.f32 %v849, 0.5
        %v854 = vmul.f32 %v850, 0.5
        %v855 = vmul.f32 %v851, 0.5
        %v856 = vmul.f32 %v852, 0.5
        %v857 = vtanh.pop %v853
        %v858 = vtanh.pop %v854
        %v859 = vtanh.pop %v855
        %v860 = vtanh.pop %v856
        %v861 = vadd.f32 %v857, 1.0
        %v862 = vadd.f32 %v858, 1.0
        %v863 = vadd.f32 %v859, 1.0
        %v864 = vadd.f32 %v860, 1.0
        %v865 = vmul.f32 %v853, %v861
        %v866 = vmul.f32 %v854, %v862
        %v867 = vmul.f32 %v855, %v863
        %v868 = vmul.f32 %v856, %v864
        %v869 = vpack.c.bf16 %v865, %v865
        %v870 = vpack.c.bf16 %v866, %v866
        %v871 = vpack.c.bf16 %v867, %v867
        %v872 = vpack.c.bf16 %v868, %v868
        %v873 = vld [vmem:[#allocation10] sm:$0xff]
        %v874 = vld [vmem:[#allocation10 + $0x8] sm:$0xff]
        %v875 = vld [vmem:[#allocation10 + $0x10] sm:$0xff]
        %v876 = vld [vmem:[#allocation10 + $0x18] sm:$0xff]
        %v877 = vld [vmem:[#allocation10 + $0x20] sm:$0xff]
        %v878 = vld [vmem:[#allocation10 + $0x28] sm:$0xff]
        %v879 = vld [vmem:[#allocation10 + $0x30] sm:$0xff]
        %v880 = vld [vmem:[#allocation10 + $0x38] sm:$0xff]
        %v881 = vld [vmem:[#allocation10 + $0x40] sm:$0xff]
        %v882 = vld [vmem:[#allocation10 + $0x48] sm:$0xff]
        %v883 = vld [vmem:[#allocation10 + $0x50] sm:$0xff]
        %v884 = vld [vmem:[#allocation10 + $0x58] sm:$0xff]
        %v885 = vld [vmem:[#allocation10 + $0x60] sm:$0xff]
        %v886 = vld [vmem:[#allocation10 + $0x68] sm:$0xff]
        %v887 = vld [vmem:[#allocation10 + $0x70] sm:$0xff]
        %v888 = vld [vmem:[#allocation10 + $0x78] sm:$0xff]
        %v889 = vld [vmem:[#allocation10 + $0x80] sm:$0xff]
        %v890 = vld [vmem:[#allocation10 + $0x88] sm:$0xff]
        %v891 = vld [vmem:[#allocation10 + $0x90] sm:$0xff]
        %v892 = vld [vmem:[#allocation10 + $0x98] sm:$0xff]
        %v893 = vld [vmem:[#allocation10 + $0xa0] sm:$0xff]
        %v894 = vld [vmem:[#allocation10 + $0xa8] sm:$0xff]
        %v895 = vld [vmem:[#allocation10 + $0xb0] sm:$0xff]
        %v896 = vld [vmem:[#allocation10 + $0xb8] sm:$0xff]
        %v897 = vld [vmem:[#allocation10 + $0xc0] sm:$0xff]
        %v898 = vld [vmem:[#allocation10 + $0xc8] sm:$0xff]
        %v899 = vld [vmem:[#allocation10 + $0xd0] sm:$0xff]
        %v900 = vld [vmem:[#allocation10 + $0xd8] sm:$0xff]
        %v901 = vld [vmem:[#allocation10 + $0xe0] sm:$0xff]
        %v902 = vld [vmem:[#allocation10 + $0xe8] sm:$0xff]
        %v903 = vld [vmem:[#allocation10 + $0xf0] sm:$0xff]
        %v904 = vld [vmem:[#allocation10 + $0xf8] sm:$0xff]
        %v905 = vld [vmem:[#allocation10 + $0x100] sm:$0xff]
        %v906 = vld [vmem:[#allocation10 + $0x108] sm:$0xff]
        %v907 = vld [vmem:[#allocation10 + $0x110] sm:$0xff]
        %v908 = vld [vmem:[#allocation10 + $0x118] sm:$0xff]
        %v909 = vld [vmem:[#allocation10 + $0x120] sm:$0xff]
        %v910 = vld [vmem:[#allocation10 + $0x128] sm:$0xff]
        %v911 = vld [vmem:[#allocation10 + $0x130] sm:$0xff]
        %v912 = vld [vmem:[#allocation10 + $0x138] sm:$0xff]
        %v913 = vld [vmem:[#allocation10 + $0x140] sm:$0xff]
        %v914 = vld [vmem:[#allocation10 + $0x148] sm:$0xff]
        %v915 = vld [vmem:[#allocation10 + $0x150] sm:$0xff]
        %v916 = vld [vmem:[#allocation10 + $0x158] sm:$0xff]
        %v917 = vld [vmem:[#allocation10 + $0x160] sm:$0xff]
        %v918 = vld [vmem:[#allocation10 + $0x168] sm:$0xff]
        %v919 = vld [vmem:[#allocation10 + $0x170] sm:$0xff]
        %v920 = vld [vmem:[#allocation10 + $0x178] sm:$0xff]
        %v921 = vld [vmem:[#allocation10 + $0x180] sm:$0xff]
        %v922 = vld [vmem:[#allocation10 + $0x188] sm:$0xff]
        %v923 = vld [vmem:[#allocation10 + $0x190] sm:$0xff]
        %v924 = vld [vmem:[#allocation10 + $0x198] sm:$0xff]
        %v925 = vld [vmem:[#allocation10 + $0x1a0] sm:$0xff]
        %v926 = vld [vmem:[#allocation10 + $0x1a8] sm:$0xff]
        %v927 = vld [vmem:[#allocation10 + $0x1b0] sm:$0xff]
        %v928 = vld [vmem:[#allocation10 + $0x1b8] sm:$0xff]
        %v929 = vld [vmem:[#allocation10 + $0x1c0] sm:$0xff]
        %v930 = vld [vmem:[#allocation10 + $0x1c8] sm:$0xff]
        %v931 = vld [vmem:[#allocation10 + $0x1d0] sm:$0xff]
        %v932 = vld [vmem:[#allocation10 + $0x1d8] sm:$0xff]
        %v933 = vld [vmem:[#allocation10 + $0x1e0] sm:$0xff]
        %v934 = vld [vmem:[#allocation10 + $0x1e8] sm:$0xff]
        %v935 = vld [vmem:[#allocation10 + $0x1f0] sm:$0xff]
        %v936 = vld [vmem:[#allocation10 + $0x1f8] sm:$0xff]
        %v937 = vld [vmem:[#allocation10 + $0x200] sm:$0xff]
        %v938 = vld [vmem:[#allocation10 + $0x208] sm:$0xff]
        %v939 = vld [vmem:[#allocation10 + $0x210] sm:$0xff]
        %v940 = vld [vmem:[#allocation10 + $0x218] sm:$0xff]
        %v941 = vld [vmem:[#allocation10 + $0x220] sm:$0xff]
        %v942 = vld [vmem:[#allocation10 + $0x228] sm:$0xff]
        %v943 = vld [vmem:[#allocation10 + $0x230] sm:$0xff]
        %v944 = vld [vmem:[#allocation10 + $0x238] sm:$0xff]
        %v945 = vld [vmem:[#allocation10 + $0x240] sm:$0xff]
        %v946 = vld [vmem:[#allocation10 + $0x248] sm:$0xff]
        %v947 = vld [vmem:[#allocation10 + $0x250] sm:$0xff]
        %v948 = vld [vmem:[#allocation10 + $0x258] sm:$0xff]
        %v949 = vld [vmem:[#allocation10 + $0x260] sm:$0xff]
        %v950 = vld [vmem:[#allocation10 + $0x268] sm:$0xff]
        %v951 = vld [vmem:[#allocation10 + $0x270] sm:$0xff]
        %v952 = vld [vmem:[#allocation10 + $0x278] sm:$0xff]
        %v953 = vld [vmem:[#allocation10 + $0x280] sm:$0xff]
        %v954 = vld [vmem:[#allocation10 + $0x288] sm:$0xff]
        %v955 = vld [vmem:[#allocation10 + $0x290] sm:$0xff]
        %v956 = vld [vmem:[#allocation10 + $0x298] sm:$0xff]
        %v957 = vld [vmem:[#allocation10 + $0x2a0] sm:$0xff]
        %v958 = vld [vmem:[#allocation10 + $0x2a8] sm:$0xff]
        %v959 = vld [vmem:[#allocation10 + $0x2b0] sm:$0xff]
        %v960 = vld [vmem:[#allocation10 + $0x2b8] sm:$0xff]
        %v961 = vld [vmem:[#allocation10 + $0x2c0] sm:$0xff]
        %v962 = vld [vmem:[#allocation10 + $0x2c8] sm:$0xff]
        %v963 = vld [vmem:[#allocation10 + $0x2d0] sm:$0xff]
        %v964 = vld [vmem:[#allocation10 + $0x2d8] sm:$0xff]
        %v965 = vld [vmem:[#allocation10 + $0x2e0] sm:$0xff]
        %v966 = vld [vmem:[#allocation10 + $0x2e8] sm:$0xff]
        %v967 = vld [vmem:[#allocation10 + $0x2f0] sm:$0xff]
        %v968 = vld [vmem:[#allocation10 + $0x2f8] sm:$0xff]
        %v969 = vld [vmem:[#allocation10 + $0x300] sm:$0xff]
        %v970 = vld [vmem:[#allocation10 + $0x308] sm:$0xff]
        %v971 = vld [vmem:[#allocation10 + $0x310] sm:$0xff]
        %v972 = vld [vmem:[#allocation10 + $0x318] sm:$0xff]
        %v973 = vld [vmem:[#allocation10 + $0x320] sm:$0xff]
        %v974 = vld [vmem:[#allocation10 + $0x328] sm:$0xff]
        %v975 = vld [vmem:[#allocation10 + $0x330] sm:$0xff]
        %v976 = vld [vmem:[#allocation10 + $0x338] sm:$0xff]
        %v977 = vld [vmem:[#allocation10 + $0x340] sm:$0xff]
        %v978 = vld [vmem:[#allocation10 + $0x348] sm:$0xff]
        %v979 = vld [vmem:[#allocation10 + $0x350] sm:$0xff]
        %v980 = vld [vmem:[#allocation10 + $0x358] sm:$0xff]
        %v981 = vld [vmem:[#allocation10 + $0x360] sm:$0xff]
        %v982 = vld [vmem:[#allocation10 + $0x368] sm:$0xff]
        %v983 = vld [vmem:[#allocation10 + $0x370] sm:$0xff]
        %v984 = vld [vmem:[#allocation10 + $0x378] sm:$0xff]
        %v985 = vld [vmem:[#allocation10 + $0x380] sm:$0xff]
        %v986 = vld [vmem:[#allocation10 + $0x388] sm:$0xff]
        %v987 = vld [vmem:[#allocation10 + $0x390] sm:$0xff]
        %v988 = vld [vmem:[#allocation10 + $0x398] sm:$0xff]
        %v989 = vld [vmem:[#allocation10 + $0x3a0] sm:$0xff]
        %v990 = vld [vmem:[#allocation10 + $0x3a8] sm:$0xff]
        %v991 = vld [vmem:[#allocation10 + $0x3b0] sm:$0xff]
        %v992 = vld [vmem:[#allocation10 + $0x3b8] sm:$0xff]
        %v993 = vld [vmem:[#allocation10 + $0x3c0] sm:$0xff]
        %v994 = vld [vmem:[#allocation10 + $0x3c8] sm:$0xff]
        %v995 = vld [vmem:[#allocation10 + $0x3d0] sm:$0xff]
        %v996 = vld [vmem:[#allocation10 + $0x3d8] sm:$0xff]
        %v997 = vld [vmem:[#allocation10 + $0x3e0] sm:$0xff]
        %v998 = vld [vmem:[#allocation10 + $0x3e8] sm:$0xff]
        %v999 = vld [vmem:[#allocation10 + $0x3f0] sm:$0xff]
        %v1000 = vld [vmem:[#allocation10 + $0x3f8] sm:$0xff]
        %v1001 = vld [vmem:[%s6] sm:$0xf]
        %v1003 = vlaneseq
        %v1004 = vshrl.u32 %v1003, 7
        %v1005 = vsub.s32 0, %v1004
        %v1006 = vrot.slane %v1001, %v1005
        %v1007 = vlaneseq
        %v1008 = vshrl.u32 %v1007, 7
        %v1009 = vsub.s32 1, %v1008
        %v1010 = vrot.slane %v1001, %v1009
        %v1011 = vlaneseq
        %v1012 = vshrl.u32 %v1011, 7
        %v1013 = vsub.s32 2, %v1012
        %v1014 = vrot.slane %v1001, %v1013
        %v1015 = vlaneseq
        %v1016 = vshrl.u32 %v1015, 7
        %v1017 = vsub.s32 3, %v1016
        %v1018 = vrot.slane %v1001, %v1017
        %v1151 = vunpack.c.l.b16 %v873
        %v1152 = vunpack.c.h.b16 %v873
        %v1153 = vunpack.c.l.b16 %v874
        %v1154 = vunpack.c.h.b16 %v874
        %v1155 = vunpack.c.l.b16 %v875
        %v1156 = vunpack.c.h.b16 %v875
        %v1157 = vunpack.c.l.b16 %v876
        %v1158 = vunpack.c.h.b16 %v876
        %v1159 = vunpack.c.l.b16 %v877
        %v1160 = vunpack.c.h.b16 %v877
        %v1161 = vunpack.c.l.b16 %v878
        %v1162 = vunpack.c.h.b16 %v878
        %v1163 = vunpack.c.l.b16 %v879
        %v1164 = vunpack.c.h.b16 %v879
        %v1165 = vunpack.c.l.b16 %v880
        %v1166 = vunpack.c.h.b16 %v880
        %v1167 = vunpack.c.l.b16 %v881
        %v1168 = vunpack.c.h.b16 %v881
        %v1169 = vunpack.c.l.b16 %v882
        %v1170 = vunpack.c.h.b16 %v882
        %v1171 = vunpack.c.l.b16 %v883
        %v1172 = vunpack.c.h.b16 %v883
        %v1173 = vunpack.c.l.b16 %v884
        %v1174 = vunpack.c.h.b16 %v884
        %v1175 = vunpack.c.l.b16 %v885
        %v1176 = vunpack.c.h.b16 %v885
        %v1177 = vunpack.c.l.b16 %v886
        %v1178 = vunpack.c.h.b16 %v886
        %v1179 = vunpack.c.l.b16 %v887
        %v1180 = vunpack.c.h.b16 %v887
        %v1181 = vunpack.c.l.b16 %v888
        %v1182 = vunpack.c.h.b16 %v888
        %v1183 = vunpack.c.l.b16 %v889
        %v1184 = vunpack.c.h.b16 %v889
        %v1185 = vunpack.c.l.b16 %v890
        %v1186 = vunpack.c.h.b16 %v890
        %v1187 = vunpack.c.l.b16 %v891
        %v1188 = vunpack.c.h.b16 %v891
        %v1189 = vunpack.c.l.b16 %v892
        %v1190 = vunpack.c.h.b16 %v892
        %v1191 = vunpack.c.l.b16 %v893
        %v1192 = vunpack.c.h.b16 %v893
        %v1193 = vunpack.c.l.b16 %v894
        %v1194 = vunpack.c.h.b16 %v894
        %v1195 = vunpack.c.l.b16 %v895
        %v1196 = vunpack.c.h.b16 %v895
        %v1197 = vunpack.c.l.b16 %v896
        %v1198 = vunpack.c.h.b16 %v896
        %v1199 = vunpack.c.l.b16 %v897
        %v1200 = vunpack.c.h.b16 %v897
        %v1201 = vunpack.c.l.b16 %v898
        %v1202 = vunpack.c.h.b16 %v898
        %v1203 = vunpack.c.l.b16 %v899
        %v1204 = vunpack.c.h.b16 %v899
        %v1205 = vunpack.c.l.b16 %v900
        %v1206 = vunpack.c.h.b16 %v900
        %v1207 = vunpack.c.l.b16 %v901
        %v1208 = vunpack.c.h.b16 %v901
        %v1209 = vunpack.c.l.b16 %v902
        %v1210 = vunpack.c.h.b16 %v902
        %v1211 = vunpack.c.l.b16 %v903
        %v1212 = vunpack.c.h.b16 %v903
        %v1213 = vunpack.c.l.b16 %v904
        %v1214 = vunpack.c.h.b16 %v904
        %v1215 = vunpack.c.l.b16 %v905
        %v1216 = vunpack.c.h.b16 %v905
        %v1217 = vunpack.c.l.b16 %v906
        %v1218 = vunpack.c.h.b16 %v906
        %v1219 = vunpack.c.l.b16 %v907
        %v1220 = vunpack.c.h.b16 %v907
        %v1221 = vunpack.c.l.b16 %v908
        %v1222 = vunpack.c.h.b16 %v908
        %v1223 = vunpack.c.l.b16 %v909
        %v1224 = vunpack.c.h.b16 %v909
        %v1225 = vunpack.c.l.b16 %v910
        %v1226 = vunpack.c.h.b16 %v910
        %v1227 = vunpack.c.l.b16 %v911
        %v1228 = vunpack.c.h.b16 %v911
        %v1229 = vunpack.c.l.b16 %v912
        %v1230 = vunpack.c.h.b16 %v912
        %v1231 = vunpack.c.l.b16 %v913
        %v1232 = vunpack.c.h.b16 %v913
        %v1233 = vunpack.c.l.b16 %v914
        %v1234 = vunpack.c.h.b16 %v914
        %v1235 = vunpack.c.l.b16 %v915
        %v1236 = vunpack.c.h.b16 %v915
        %v1237 = vunpack.c.l.b16 %v916
        %v1238 = vunpack.c.h.b16 %v916
        %v1239 = vunpack.c.l.b16 %v917
        %v1240 = vunpack.c.h.b16 %v917
        %v1241 = vunpack.c.l.b16 %v918
        %v1242 = vunpack.c.h.b16 %v918
        %v1243 = vunpack.c.l.b16 %v919
        %v1244 = vunpack.c.h.b16 %v919
        %v1245 = vunpack.c.l.b16 %v920
        %v1246 = vunpack.c.h.b16 %v920
        %v1247 = vunpack.c.l.b16 %v921
        %v1248 = vunpack.c.h.b16 %v921
        %v1249 = vunpack.c.l.b16 %v922
        %v1250 = vunpack.c.h.b16 %v922
        %v1251 = vunpack.c.l.b16 %v923
        %v1252 = vunpack.c.h.b16 %v923
        %v1253 = vunpack.c.l.b16 %v924
        %v1254 = vunpack.c.h.b16 %v924
        %v1255 = vunpack.c.l.b16 %v925
        %v1256 = vunpack.c.h.b16 %v925
        %v1257 = vunpack.c.l.b16 %v926
        %v1258 = vunpack.c.h.b16 %v926
        %v1259 = vunpack.c.l.b16 %v927
        %v1260 = vunpack.c.h.b16 %v927
        %v1261 = vunpack.c.l.b16 %v928
        %v1262 = vunpack.c.h.b16 %v928
        %v1263 = vunpack.c.l.b16 %v929
        %v1264 = vunpack.c.h.b16 %v929
        %v1265 = vunpack.c.l.b16 %v930
        %v1266 = vunpack.c.h.b16 %v930
        %v1267 = vunpack.c.l.b16 %v931
        %v1268 = vunpack.c.h.b16 %v931
        %v1269 = vunpack.c.l.b16 %v932
        %v1270 = vunpack.c.h.b16 %v932
        %v1271 = vunpack.c.l.b16 %v933
        %v1272 = vunpack.c.h.b16 %v933
        %v1273 = vunpack.c.l.b16 %v934
        %v1274 = vunpack.c.h.b16 %v934
        %v1275 = vunpack.c.l.b16 %v935
        %v1276 = vunpack.c.h.b16 %v935
        %v1277 = vunpack.c.l.b16 %v936
        %v1278 = vunpack.c.h.b16 %v936
        %v1279 = vunpack.c.l.b16 %v937
        %v1280 = vunpack.c.h.b16 %v937
        %v1281 = vunpack.c.l.b16 %v938
        %v1282 = vunpack.c.h.b16 %v938
        %v1283 = vunpack.c.l.b16 %v939
        %v1284 = vunpack.c.h.b16 %v939
        %v1285 = vunpack.c.l.b16 %v940
        %v1286 = vunpack.c.h.b16 %v940
        %v1287 = vunpack.c.l.b16 %v941
        %v1288 = vunpack.c.h.b16 %v941
        %v1289 = vunpack.c.l.b16 %v942
        %v1290 = vunpack.c.h.b16 %v942
        %v1291 = vunpack.c.l.b16 %v943
        %v1292 = vunpack.c.h.b16 %v943
        %v1293 = vunpack.c.l.b16 %v944
        %v1294 = vunpack.c.h.b16 %v944
        %v1295 = vunpack.c.l.b16 %v945
        %v1296 = vunpack.c.h.b16 %v945
        %v1297 = vunpack.c.l.b16 %v946
        %v1298 = vunpack.c.h.b16 %v946
        %v1299 = vunpack.c.l.b16 %v947
        %v1300 = vunpack.c.h.b16 %v947
        %v1301 = vunpack.c.l.b16 %v948
        %v1302 = vunpack.c.h.b16 %v948
        %v1303 = vunpack.c.l.b16 %v949
        %v1304 = vunpack.c.h.b16 %v949
        %v1305 = vunpack.c.l.b16 %v950
        %v1306 = vunpack.c.h.b16 %v950
        %v1307 = vunpack.c.l.b16 %v951
        %v1308 = vunpack.c.h.b16 %v951
        %v1309 = vunpack.c.l.b16 %v952
        %v1310 = vunpack.c.h.b16 %v952
        %v1311 = vunpack.c.l.b16 %v953
        %v1312 = vunpack.c.h.b16 %v953
        %v1313 = vunpack.c.l.b16 %v954
        %v1314 = vunpack.c.h.b16 %v954
        %v1315 = vunpack.c.l.b16 %v955
        %v1316 = vunpack.c.h.b16 %v955
        %v1317 = vunpack.c.l.b16 %v956
        %v1318 = vunpack.c.h.b16 %v956
        %v1319 = vunpack.c.l.b16 %v957
        %v1320 = vunpack.c.h.b16 %v957
        %v1321 = vunpack.c.l.b16 %v958
        %v1322 = vunpack.c.h.b16 %v958
        %v1323 = vunpack.c.l.b16 %v959
        %v1324 = vunpack.c.h.b16 %v959
        %v1325 = vunpack.c.l.b16 %v960
        %v1326 = vunpack.c.h.b16 %v960
        %v1327 = vunpack.c.l.b16 %v961
        %v1328 = vunpack.c.h.b16 %v961
        %v1329 = vunpack.c.l.b16 %v962
        %v1330 = vunpack.c.h.b16 %v962
        %v1331 = vunpack.c.l.b16 %v963
        %v1332 = vunpack.c.h.b16 %v963
        %v1333 = vunpack.c.l.b16 %v964
        %v1334 = vunpack.c.h.b16 %v964
        %v1335 = vunpack.c.l.b16 %v965
        %v1336 = vunpack.c.h.b16 %v965
        %v1337 = vunpack.c.l.b16 %v966
        %v1338 = vunpack.c.h.b16 %v966
        %v1339 = vunpack.c.l.b16 %v967
        %v1340 = vunpack.c.h.b16 %v967
        %v1341 = vunpack.c.l.b16 %v968
        %v1342 = vunpack.c.h.b16 %v968
        %v1343 = vunpack.c.l.b16 %v969
        %v1344 = vunpack.c.h.b16 %v969
        %v1345 = vunpack.c.l.b16 %v970
        %v1346 = vunpack.c.h.b16 %v970
        %v1347 = vunpack.c.l.b16 %v971
        %v1348 = vunpack.c.h.b16 %v971
        %v1349 = vunpack.c.l.b16 %v972
        %v1350 = vunpack.c.h.b16 %v972
        %v1351 = vunpack.c.l.b16 %v973
        %v1352 = vunpack.c.h.b16 %v973
        %v1353 = vunpack.c.l.b16 %v974
        %v1354 = vunpack.c.h.b16 %v974
        %v1355 = vunpack.c.l.b16 %v975
        %v1356 = vunpack.c.h.b16 %v975
        %v1357 = vunpack.c.l.b16 %v976
        %v1358 = vunpack.c.h.b16 %v976
        %v1359 = vunpack.c.l.b16 %v977
        %v1360 = vunpack.c.h.b16 %v977
        %v1361 = vunpack.c.l.b16 %v978
        %v1362 = vunpack.c.h.b16 %v978
        %v1363 = vunpack.c.l.b16 %v979
        %v1364 = vunpack.c.h.b16 %v979
        %v1365 = vunpack.c.l.b16 %v980
        %v1366 = vunpack.c.h.b16 %v980
        %v1367 = vunpack.c.l.b16 %v981
        %v1368 = vunpack.c.h.b16 %v981
        %v1369 = vunpack.c.l.b16 %v982
        %v1370 = vunpack.c.h.b16 %v982
        %v1371 = vunpack.c.l.b16 %v983
        %v1372 = vunpack.c.h.b16 %v983
        %v1373 = vunpack.c.l.b16 %v984
        %v1374 = vunpack.c.h.b16 %v984
        %v1375 = vunpack.c.l.b16 %v985
        %v1376 = vunpack.c.h.b16 %v985
        %v1377 = vunpack.c.l.b16 %v986
        %v1378 = vunpack.c.h.b16 %v986
        %v1379 = vunpack.c.l.b16 %v987
        %v1380 = vunpack.c.h.b16 %v987
        %v1381 = vunpack.c.l.b16 %v988
        %v1382 = vunpack.c.h.b16 %v988
        %v1383 = vunpack.c.l.b16 %v989
        %v1384 = vunpack.c.h.b16 %v989
        %v1385 = vunpack.c.l.b16 %v990
        %v1386 = vunpack.c.h.b16 %v990
        %v1387 = vunpack.c.l.b16 %v991
        %v1388 = vunpack.c.h.b16 %v991
        %v1389 = vunpack.c.l.b16 %v992
        %v1390 = vunpack.c.h.b16 %v992
        %v1391 = vunpack.c.l.b16 %v993
        %v1392 = vunpack.c.h.b16 %v993
        %v1393 = vunpack.c.l.b16 %v994
        %v1394 = vunpack.c.h.b16 %v994
        %v1395 = vunpack.c.l.b16 %v995
        %v1396 = vunpack.c.h.b16 %v995
        %v1397 = vunpack.c.l.b16 %v996
        %v1398 = vunpack.c.h.b16 %v996
        %v1399 = vunpack.c.l.b16 %v997
        %v1400 = vunpack.c.h.b16 %v997
        %v1401 = vunpack.c.l.b16 %v998
        %v1402 = vunpack.c.h.b16 %v998
        %v1403 = vunpack.c.l.b16 %v999
        %v1404 = vunpack.c.h.b16 %v999
        %v1405 = vunpack.c.l.b16 %v1000
        %v1406 = vunpack.c.h.b16 %v1000
        %v1407 = vpack.c.b16 %v1155, %v1151
        %v1408 = vpack.c.b16 %v1156, %v1152
        %v1409 = vpack.c.b16 %v1157, %v1153
        %v1410 = vpack.c.b16 %v1158, %v1154
        %v1411 = vpack.c.b16 %v1163, %v1159
        %v1412 = vpack.c.b16 %v1164, %v1160
        %v1413 = vpack.c.b16 %v1165, %v1161
        %v1414 = vpack.c.b16 %v1166, %v1162
        %v1415 = vpack.c.b16 %v1171, %v1167
        %v1416 = vpack.c.b16 %v1172, %v1168
        %v1417 = vpack.c.b16 %v1173, %v1169
        %v1418 = vpack.c.b16 %v1174, %v1170
        %v1419 = vpack.c.b16 %v1179, %v1175
        %v1420 = vpack.c.b16 %v1180, %v1176
        %v1421 = vpack.c.b16 %v1181, %v1177
        %v1422 = vpack.c.b16 %v1182, %v1178
        %v1423 = vpack.c.b16 %v1187, %v1183
        %v1424 = vpack.c.b16 %v1188, %v1184
        %v1425 = vpack.c.b16 %v1189, %v1185
        %v1426 = vpack.c.b16 %v1190, %v1186
        %v1427 = vpack.c.b16 %v1195, %v1191
        %v1428 = vpack.c.b16 %v1196, %v1192
        %v1429 = vpack.c.b16 %v1197, %v1193
        %v1430 = vpack.c.b16 %v1198, %v1194
        %v1431 = vpack.c.b16 %v1203, %v1199
        %v1432 = vpack.c.b16 %v1204, %v1200
        %v1433 = vpack.c.b16 %v1205, %v1201
        %v1434 = vpack.c.b16 %v1206, %v1202
        %v1435 = vpack.c.b16 %v1211, %v1207
        %v1436 = vpack.c.b16 %v1212, %v1208
        %v1437 = vpack.c.b16 %v1213, %v1209
        %v1438 = vpack.c.b16 %v1214, %v1210
        %v1439 = vpack.c.b16 %v1219, %v1215
        %v1440 = vpack.c.b16 %v1220, %v1216
        %v1441 = vpack.c.b16 %v1221, %v1217
        %v1442 = vpack.c.b16 %v1222, %v1218
        %v1443 = vpack.c.b16 %v1227, %v1223
        %v1444 = vpack.c.b16 %v1228, %v1224
        %v1445 = vpack.c.b16 %v1229, %v1225
        %v1446 = vpack.c.b16 %v1230, %v1226
        %v1447 = vpack.c.b16 %v1235, %v1231
        %v1448 = vpack.c.b16 %v1236, %v1232
        %v1449 = vpack.c.b16 %v1237, %v1233
        %v1450 = vpack.c.b16 %v1238, %v1234
        %v1451 = vpack.c.b16 %v1243, %v1239
        %v1452 = vpack.c.b16 %v1244, %v1240
        %v1453 = vpack.c.b16 %v1245, %v1241
        %v1454 = vpack.c.b16 %v1246, %v1242
        %v1455 = vpack.c.b16 %v1251, %v1247
        %v1456 = vpack.c.b16 %v1252, %v1248
        %v1457 = vpack.c.b16 %v1253, %v1249
        %v1458 = vpack.c.b16 %v1254, %v1250
        %v1459 = vpack.c.b16 %v1259, %v1255
        %v1460 = vpack.c.b16 %v1260, %v1256
        %v1461 = vpack.c.b16 %v1261, %v1257
        %v1462 = vpack.c.b16 %v1262, %v1258
        %v1463 = vpack.c.b16 %v1267, %v1263
        %v1464 = vpack.c.b16 %v1268, %v1264
        %v1465 = vpack.c.b16 %v1269, %v1265
        %v1466 = vpack.c.b16 %v1270, %v1266
        %v1467 = vpack.c.b16 %v1275, %v1271
        %v1468 = vpack.c.b16 %v1276, %v1272
        %v1469 = vpack.c.b16 %v1277, %v1273
        %v1470 = vpack.c.b16 %v1278, %v1274
        %v1471 = vpack.c.b16 %v1283, %v1279
        %v1472 = vpack.c.b16 %v1284, %v1280
        %v1473 = vpack.c.b16 %v1285, %v1281
        %v1474 = vpack.c.b16 %v1286, %v1282
        %v1475 = vpack.c.b16 %v1291, %v1287
        %v1476 = vpack.c.b16 %v1292, %v1288
        %v1477 = vpack.c.b16 %v1293, %v1289
        %v1478 = vpack.c.b16 %v1294, %v1290
        %v1479 = vpack.c.b16 %v1299, %v1295
        %v1480 = vpack.c.b16 %v1300, %v1296
        %v1481 = vpack.c.b16 %v1301, %v1297
        %v1482 = vpack.c.b16 %v1302, %v1298
        %v1483 = vpack.c.b16 %v1307, %v1303
        %v1484 = vpack.c.b16 %v1308, %v1304
        %v1485 = vpack.c.b16 %v1309, %v1305
        %v1486 = vpack.c.b16 %v1310, %v1306
        %v1487 = vpack.c.b16 %v1315, %v1311
        %v1488 = vpack.c.b16 %v1316, %v1312
        %v1489 = vpack.c.b16 %v1317, %v1313
        %v1490 = vpack.c.b16 %v1318, %v1314
        %v1491 = vpack.c.b16 %v1323, %v1319
        %v1492 = vpack.c.b16 %v1324, %v1320
        %v1493 = vpack.c.b16 %v1325, %v1321
        %v1494 = vpack.c.b16 %v1326, %v1322
        %v1495 = vpack.c.b16 %v1331, %v1327
        %v1496 = vpack.c.b16 %v1332, %v1328
        %v1497 = vpack.c.b16 %v1333, %v1329
        %v1498 = vpack.c.b16 %v1334, %v1330
        %v1499 = vpack.c.b16 %v1339, %v1335
        %v1500 = vpack.c.b16 %v1340, %v1336
        %v1501 = vpack.c.b16 %v1341, %v1337
        %v1502 = vpack.c.b16 %v1342, %v1338
        %v1503 = vpack.c.b16 %v1347, %v1343
        %v1504 = vpack.c.b16 %v1348, %v1344
        %v1505 = vpack.c.b16 %v1349, %v1345
        %v1506 = vpack.c.b16 %v1350, %v1346
        %v1507 = vpack.c.b16 %v1355, %v1351
        %v1508 = vpack.c.b16 %v1356, %v1352
        %v1509 = vpack.c.b16 %v1357, %v1353
        %v1510 = vpack.c.b16 %v1358, %v1354
        %v1511 = vpack.c.b16 %v1363, %v1359
        %v1512 = vpack.c.b16 %v1364, %v1360
        %v1513 = vpack.c.b16 %v1365, %v1361
        %v1514 = vpack.c.b16 %v1366, %v1362
        %v1515 = vpack.c.b16 %v1371, %v1367
        %v1516 = vpack.c.b16 %v1372, %v1368
        %v1517 = vpack.c.b16 %v1373, %v1369
        %v1518 = vpack.c.b16 %v1374, %v1370
        %v1519 = vpack.c.b16 %v1379, %v1375
        %v1520 = vpack.c.b16 %v1380, %v1376
        %v1521 = vpack.c.b16 %v1381, %v1377
        %v1522 = vpack.c.b16 %v1382, %v1378
        %v1523 = vpack.c.b16 %v1387, %v1383
        %v1524 = vpack.c.b16 %v1388, %v1384
        %v1525 = vpack.c.b16 %v1389, %v1385
        %v1526 = vpack.c.b16 %v1390, %v1386
        %v1527 = vpack.c.b16 %v1395, %v1391
        %v1528 = vpack.c.b16 %v1396, %v1392
        %v1529 = vpack.c.b16 %v1397, %v1393
        %v1530 = vpack.c.b16 %v1398, %v1394
        %v1531 = vpack.c.b16 %v1403, %v1399
        %v1532 = vpack.c.b16 %v1404, %v1400
        %v1533 = vpack.c.b16 %v1405, %v1401
        %v1534 = vpack.c.b16 %v1406, %v1402
        %1663 = vmatprep.subr.bf16.mxu0 %v1408
        %1664 = vmatpush1.bf16.msra.mxu0 %v1407
        %1665 = vmatprep.subr.bf16.mxu0 %v1412
        %1666 = vmatpush1.bf16.msra.mxu0 %v1411
        %1667 = vmatprep.subr.bf16.mxu0 %v1416
        %1668 = vmatpush1.bf16.msra.mxu0 %v1415
        %1669 = vmatprep.subr.bf16.mxu0 %v1420
        %1670 = vmatpush1.bf16.msra.mxu0 %v1419
        %1671 = vmatprep.subr.bf16.mxu0 %v1424
        %1672 = vmatpush1.bf16.msra.mxu0 %v1423
        %1673 = vmatprep.subr.bf16.mxu0 %v1428
        %1674 = vmatpush1.bf16.msra.mxu0 %v1427
        %1675 = vmatprep.subr.bf16.mxu0 %v1432
        %1676 = vmatpush1.bf16.msra.mxu0 %v1431
        %1677 = vmatprep.subr.bf16.mxu0 %v1436
        %1678 = vmatpush1.bf16.msra.mxu0 %v1435
        %1679 = vmatprep.subr.bf16.mxu0 %v1440
        %1680 = vmatpush1.bf16.msra.mxu0 %v1439
        %1681 = vmatprep.subr.bf16.mxu0 %v1444
        %1682 = vmatpush1.bf16.msra.mxu0 %v1443
        %1683 = vmatprep.subr.bf16.mxu0 %v1448
        %1684 = vmatpush1.bf16.msra.mxu0 %v1447
        %1685 = vmatprep.subr.bf16.mxu0 %v1452
        %1686 = vmatpush1.bf16.msra.mxu0 %v1451
        %1687 = vmatprep.subr.bf16.mxu0 %v1456
        %1688 = vmatpush1.bf16.msra.mxu0 %v1455
        %1689 = vmatprep.subr.bf16.mxu0 %v1460
        %1690 = vmatpush1.bf16.msra.mxu0 %v1459
        %1691 = vmatprep.subr.bf16.mxu0 %v1464
        %1692 = vmatpush1.bf16.msra.mxu0 %v1463
        %1693 = vmatprep.subr.bf16.mxu0 %v1468
        %1694 = vmatpush1.bf16.msra.mxu0 %v1467
        %1695 = vmatprep.mubr.bf16.mxu0 %v870
        %1696 = vmatmul.mubr.bf16.gmra.mrb[0].mxu0 %v869
        %v1697 = vpop.f32.mrb[0].mxu0
        %v1698 = vadd.f32 %v1006, %v1697
        %v1699 = vpop.f32.mrb[0].mxu0
        %v1700 = vadd.f32 %v1010, %v1699
        %v1701 = vpop.f32.mrb[0].mxu0
        %v1702 = vpop.f32.mrb[0].mxu0
        %1703 = vdwg.mxu0
        %1704 = vmatprep.subr.bf16.mxu0 %v1472
        %1705 = vmatpush1.bf16.msra.mxu0 %v1471
        %1706 = vmatprep.subr.bf16.mxu0 %v1476
        %1707 = vmatpush1.bf16.msra.mxu0 %v1475
        %1708 = vmatprep.subr.bf16.mxu0 %v1480
        %1709 = vmatpush1.bf16.msra.mxu0 %v1479
        %1710 = vmatprep.subr.bf16.mxu0 %v1484
        %1711 = vmatpush1.bf16.msra.mxu0 %v1483
        %1712 = vmatprep.subr.bf16.mxu0 %v1488
        %1713 = vmatpush1.bf16.msra.mxu0 %v1487
        %1714 = vmatprep.subr.bf16.mxu0 %v1492
        %1715 = vmatpush1.bf16.msra.mxu0 %v1491
        %1716 = vmatprep.subr.bf16.mxu0 %v1496
        %1717 = vmatpush1.bf16.msra.mxu0 %v1495
        %1718 = vmatprep.subr.bf16.mxu0 %v1500
        %1719 = vmatpush1.bf16.msra.mxu0 %v1499
        %1720 = vmatprep.subr.bf16.mxu0 %v1504
        %1721 = vmatpush1.bf16.msra.mxu0 %v1503
        %1722 = vmatprep.subr.bf16.mxu0 %v1508
        %1723 = vmatpush1.bf16.msra.mxu0 %v1507
        %1724 = vmatprep.subr.bf16.mxu0 %v1512
        %1725 = vmatpush1.bf16.msra.mxu0 %v1511
        %1726 = vmatprep.subr.bf16.mxu0 %v1516
        %1727 = vmatpush1.bf16.msra.mxu0 %v1515
        %1728 = vmatprep.subr.bf16.mxu0 %v1520
        %1729 = vmatpush1.bf16.msra.mxu0 %v1519
        %1730 = vmatprep.subr.bf16.mxu0 %v1524
        %1731 = vmatpush1.bf16.msra.mxu0 %v1523
        %1732 = vmatprep.subr.bf16.mxu0 %v1528
        %1733 = vmatpush1.bf16.msra.mxu0 %v1527
        %1734 = vmatprep.subr.bf16.mxu0 %v1532
        %1735 = vmatpush1.bf16.msra.mxu0 %v1531
        %1736 = vmatprep.mubr.bf16.mxu0 %v872
        %1737 = vmatmul.mubr.bf16.gmra.mrb[0].mxu0 %v871
        %v1738 = vpop.f32.mrb[0].mxu0
        %v1739 = vadd.f32 %v1698, %v1738
        %v1740 = vpop.f32.mrb[0].mxu0
        %v1741 = vadd.f32 %v1700, %v1740
        %v1742 = vpop.f32.mrb[0].mxu0
        %v1743 = vpop.f32.mrb[0].mxu0
        %1744 = vdwg.mxu0
        %1745 = vmatprep.subr.bf16.mxu0 %v1410
        %1746 = vmatpush1.bf16.msra.mxu0 %v1409
        %1747 = vmatprep.subr.bf16.mxu0 %v1414
        %1748 = vmatpush1.bf16.msra.mxu0 %v1413
        %1749 = vmatprep.subr.bf16.mxu0 %v1418
        %1750 = vmatpush1.bf16.msra.mxu0 %v1417
        %1751 = vmatprep.subr.bf16.mxu0 %v1422
        %1752 = vmatpush1.bf16.msra.mxu0 %v1421
        %1753 = vmatprep.subr.bf16.mxu0 %v1426
        %1754 = vmatpush1.bf16.msra.mxu0 %v1425
        %1755 = vmatprep.subr.bf16.mxu0 %v1430
        %1756 = vmatpush1.bf16.msra.mxu0 %v1429
        %1757 = vmatprep.subr.bf16.mxu0 %v1434
        %1758 = vmatpush1.bf16.msra.mxu0 %v1433
        %1759 = vmatprep.subr.bf16.mxu0 %v1438
        %1760 = vmatpush1.bf16.msra.mxu0 %v1437
        %1761 = vmatprep.subr.bf16.mxu0 %v1442
        %1762 = vmatpush1.bf16.msra.mxu0 %v1441
        %1763 = vmatprep.subr.bf16.mxu0 %v1446
        %1764 = vmatpush1.bf16.msra.mxu0 %v1445
        %1765 = vmatprep.subr.bf16.mxu0 %v1450
        %1766 = vmatpush1.bf16.msra.mxu0 %v1449
        %1767 = vmatprep.subr.bf16.mxu0 %v1454
        %1768 = vmatpush1.bf16.msra.mxu0 %v1453
        %1769 = vmatprep.subr.bf16.mxu0 %v1458
        %1770 = vmatpush1.bf16.msra.mxu0 %v1457
        %1771 = vmatprep.subr.bf16.mxu0 %v1462
        %1772 = vmatpush1.bf16.msra.mxu0 %v1461
        %1773 = vmatprep.subr.bf16.mxu0 %v1466
        %1774 = vmatpush1.bf16.msra.mxu0 %v1465
        %1775 = vmatprep.subr.bf16.mxu0 %v1470
        %1776 = vmatpush1.bf16.msra.mxu0 %v1469
        %1777 = vmatprep.mubr.bf16.mxu0 %v870
        %1778 = vmatmul.mubr.bf16.gmra.mrb[0].mxu0 %v869
        %v1779 = vpop.f32.mrb[0].mxu0
        %v1780 = vadd.f32 %v1014, %v1779
        %v1781 = vpop.f32.mrb[0].mxu0
        %v1782 = vadd.f32 %v1018, %v1781
        %v1783 = vpop.f32.mrb[0].mxu0
        %v1784 = vpop.f32.mrb[0].mxu0
        %1785 = vdwg.mxu0
        %1786 = vmatprep.subr.bf16.mxu0 %v1474
        %1787 = vmatpush1.bf16.msra.mxu0 %v1473
        %1788 = vmatprep.subr.bf16.mxu0 %v1478
        %1789 = vmatpush1.bf16.msra.mxu0 %v1477
        %1790 = vmatprep.subr.bf16.mxu0 %v1482
        %1791 = vmatpush1.bf16.msra.mxu0 %v1481
        %1792 = vmatprep.subr.bf16.mxu0 %v1486
        %1793 = vmatpush1.bf16.msra.mxu0 %v1485
        %1794 = vmatprep.subr.bf16.mxu0 %v1490
        %1795 = vmatpush1.bf16.msra.mxu0 %v1489
        %1796 = vmatprep.subr.bf16.mxu0 %v1494
        %1797 = vmatpush1.bf16.msra.mxu0 %v1493
        %1798 = vmatprep.subr.bf16.mxu0 %v1498
        %1799 = vmatpush1.bf16.msra.mxu0 %v1497
        %1800 = vmatprep.subr.bf16.mxu0 %v1502
        %1801 = vmatpush1.bf16.msra.mxu0 %v1501
        %1802 = vmatprep.subr.bf16.mxu0 %v1506
        %1803 = vmatpush1.bf16.msra.mxu0 %v1505
        %1804 = vmatprep.subr.bf16.mxu0 %v1510
        %1805 = vmatpush1.bf16.msra.mxu0 %v1509
        %1806 = vmatprep.subr.bf16.mxu0 %v1514
        %1807 = vmatpush1.bf16.msra.mxu0 %v1513
        %1808 = vmatprep.subr.bf16.mxu0 %v1518
        %1809 = vmatpush1.bf16.msra.mxu0 %v1517
        %1810 = vmatprep.subr.bf16.mxu0 %v1522
        %1811 = vmatpush1.bf16.msra.mxu0 %v1521
        %1812 = vmatprep.subr.bf16.mxu0 %v1526
        %1813 = vmatpush1.bf16.msra.mxu0 %v1525
        %1814 = vmatprep.subr.bf16.mxu0 %v1530
        %1815 = vmatpush1.bf16.msra.mxu0 %v1529
        %1816 = vmatprep.subr.bf16.mxu0 %v1534
        %1817 = vmatpush1.bf16.msra.mxu0 %v1533
        %1818 = vmatprep.mubr.bf16.mxu0 %v872
        %1819 = vmatmul.mubr.bf16.gmra.mrb[0].mxu0 %v871
        %v1820 = vpop.f32.mrb[0].mxu0
        %v1821 = vadd.f32 %v1780, %v1820
        %v1822 = vpop.f32.mrb[0].mxu0
        %v1823 = vadd.f32 %v1782, %v1822
        %v1824 = vpop.f32.mrb[0].mxu0
        %v1825 = vpop.f32.mrb[0].mxu0
        %1826 = vdwg.mxu0
        %v1827 = vmul.f32 %v1739, 0.5
        %v1828 = vmul.f32 %v1741, 0.5
        %v1829 = vmul.f32 %v1821, 0.5
        %v1830 = vmul.f32 %v1823, 0.5
        %v1831 = vtanh.pop %v1827
        %v1832 = vtanh.pop %v1828
        %v1833 = vtanh.pop %v1829
        %v1834 = vtanh.pop %v1830
        %v1835 = vadd.f32 %v1831, 1.0
        %v1836 = vadd.f32 %v1832, 1.0
        %v1837 = vadd.f32 %v1833, 1.0
        %v1838 = vadd.f32 %v1834, 1.0
        %v1839 = vmul.f32 %v1827, %v1835
        %v1840 = vmul.f32 %v1828, %v1836
        %v1841 = vmul.f32 %v1829, %v1837
        %v1842 = vmul.f32 %v1830, %v1838
        %v1843 = vpack.c.bf16 %v1839, %v1839
        %v1844 = vpack.c.bf16 %v1840, %v1840
        %v1845 = vpack.c.bf16 %v1841, %v1841
        %v1846 = vpack.c.bf16 %v1842, %v1842
        %v1847 = vld [vmem:[#allocation11] sm:$0xf]
        %v1848 = vld [vmem:[#allocation11 + $0x4] sm:$0xf]
        %v1849 = vld [vmem:[#allocation11 + $0x8] sm:$0xf]
        %v1850 = vld [vmem:[#allocation11 + $0xc] sm:$0xf]
        %v1851 = vld [vmem:[#allocation11 + $0x10] sm:$0xf]
        %v1852 = vld [vmem:[#allocation11 + $0x14] sm:$0xf]
        %v1853 = vld [vmem:[#allocation11 + $0x18] sm:$0xf]
        %v1854 = vld [vmem:[#allocation11 + $0x1c] sm:$0xf]
        %v1855 = vld [vmem:[#allocation11 + $0x20] sm:$0xf]
        %v1856 = vld [vmem:[#allocation11 + $0x24] sm:$0xf]
        %v1857 = vld [vmem:[#allocation11 + $0x28] sm:$0xf]
        %v1858 = vld [vmem:[#allocation11 + $0x2c] sm:$0xf]
        %v1859 = vld [vmem:[#allocation11 + $0x30] sm:$0xf]
        %v1860 = vld [vmem:[#allocation11 + $0x34] sm:$0xf]
        %v1861 = vld [vmem:[#allocation11 + $0x38] sm:$0xf]
        %v1862 = vld [vmem:[#allocation11 + $0x3c] sm:$0xf]
        %v1863 = vld [vmem:[#allocation11 + $0x40] sm:$0xf]
        %v1864 = vld [vmem:[#allocation11 + $0x44] sm:$0xf]
        %v1865 = vld [vmem:[#allocation11 + $0x48] sm:$0xf]
        %v1866 = vld [vmem:[#allocation11 + $0x4c] sm:$0xf]
        %v1867 = vld [vmem:[#allocation11 + $0x50] sm:$0xf]
        %v1868 = vld [vmem:[#allocation11 + $0x54] sm:$0xf]
        %v1869 = vld [vmem:[#allocation11 + $0x58] sm:$0xf]
        %v1870 = vld [vmem:[#allocation11 + $0x5c] sm:$0xf]
        %v1871 = vld [vmem:[#allocation11 + $0x60] sm:$0xf]
        %v1872 = vld [vmem:[#allocation11 + $0x64] sm:$0xf]
        %v1873 = vld [vmem:[#allocation11 + $0x68] sm:$0xf]
        %v1874 = vld [vmem:[#allocation11 + $0x6c] sm:$0xf]
        %v1875 = vld [vmem:[#allocation11 + $0x70] sm:$0xf]
        %v1876 = vld [vmem:[#allocation11 + $0x74] sm:$0xf]
        %v1877 = vld [vmem:[#allocation11 + $0x78] sm:$0xf]
        %v1878 = vld [vmem:[#allocation11 + $0x7c] sm:$0xf]
        %v1879 = vld [vmem:[#allocation11 + $0x80] sm:$0xf]
        %v1880 = vld [vmem:[#allocation11 + $0x84] sm:$0xf]
        %v1881 = vld [vmem:[#allocation11 + $0x88] sm:$0xf]
        %v1882 = vld [vmem:[#allocation11 + $0x8c] sm:$0xf]
        %v1883 = vld [vmem:[#allocation11 + $0x90] sm:$0xf]
        %v1884 = vld [vmem:[#allocation11 + $0x94] sm:$0xf]
        %v1885 = vld [vmem:[#allocation11 + $0x98] sm:$0xf]
        %v1886 = vld [vmem:[#allocation11 + $0x9c] sm:$0xf]
        %v1887 = vld [vmem:[#allocation11 + $0xa0] sm:$0xf]
        %v1888 = vld [vmem:[#allocation11 + $0xa4] sm:$0xf]
        %v1889 = vld [vmem:[#allocation11 + $0xa8] sm:$0xf]
        %v1890 = vld [vmem:[#allocation11 + $0xac] sm:$0xf]
        %v1891 = vld [vmem:[#allocation11 + $0xb0] sm:$0xf]
        %v1892 = vld [vmem:[#allocation11 + $0xb4] sm:$0xf]
        %v1893 = vld [vmem:[#allocation11 + $0xb8] sm:$0xf]
        %v1894 = vld [vmem:[#allocation11 + $0xbc] sm:$0xf]
        %v1895 = vld [vmem:[#allocation11 + $0xc0] sm:$0xf]
        %v1896 = vld [vmem:[#allocation11 + $0xc4] sm:$0xf]
        %v1897 = vld [vmem:[#allocation11 + $0xc8] sm:$0xf]
        %v1898 = vld [vmem:[#allocation11 + $0xcc] sm:$0xf]
        %v1899 = vld [vmem:[#allocation11 + $0xd0] sm:$0xf]
        %v1900 = vld [vmem:[#allocation11 + $0xd4] sm:$0xf]
        %v1901 = vld [vmem:[#allocation11 + $0xd8] sm:$0xf]
        %v1902 = vld [vmem:[#allocation11 + $0xdc] sm:$0xf]
        %v1903 = vld [vmem:[#allocation11 + $0xe0] sm:$0xf]
        %v1904 = vld [vmem:[#allocation11 + $0xe4] sm:$0xf]
        %v1905 = vld [vmem:[#allocation11 + $0xe8] sm:$0xf]
        %v1906 = vld [vmem:[#allocation11 + $0xec] sm:$0xf]
        %v1907 = vld [vmem:[#allocation11 + $0xf0] sm:$0xf]
        %v1908 = vld [vmem:[#allocation11 + $0xf4] sm:$0xf]
        %v1909 = vld [vmem:[#allocation11 + $0xf8] sm:$0xf]
        %v1910 = vld [vmem:[#allocation11 + $0xfc] sm:$0xf]
        %v1911 = vld [vmem:[%s8] sm:$0x1]
        %v1913 = vlaneseq
        %v1914 = vshrl.u32 %v1913, 7
        %v1915 = vsub.s32 0, %v1914
        %v1916 = vrot.slane %v1911, %v1915
        %v1982 = vunpack.c.l.b16 %v1847
        %v1983 = vunpack.c.l.b16 %v1848
        %v1984 = vunpack.c.l.b16 %v1849
        %v1985 = vunpack.c.l.b16 %v1850
        %v1986 = vunpack.c.l.b16 %v1851
        %v1987 = vunpack.c.l.b16 %v1852
        %v1988 = vunpack.c.l.b16 %v1853
        %v1989 = vunpack.c.l.b16 %v1854
        %v1990 = vunpack.c.l.b16 %v1855
        %v1991 = vunpack.c.l.b16 %v1856
        %v1992 = vunpack.c.l.b16 %v1857
        %v1993 = vunpack.c.l.b16 %v1858
        %v1994 = vunpack.c.l.b16 %v1859
        %v1995 = vunpack.c.l.b16 %v1860
        %v1996 = vunpack.c.l.b16 %v1861
        %v1997 = vunpack.c.l.b16 %v1862
        %v1998 = vunpack.c.l.b16 %v1863
        %v1999 = vunpack.c.l.b16 %v1864
        %v2000 = vunpack.c.l.b16 %v1865
        %v2001 = vunpack.c.l.b16 %v1866
        %v2002 = vunpack.c.l.b16 %v1867
        %v2003 = vunpack.c.l.b16 %v1868
        %v2004 = vunpack.c.l.b16 %v1869
        %v2005 = vunpack.c.l.b16 %v1870
        %v2006 = vunpack.c.l.b16 %v1871
        %v2007 = vunpack.c.l.b16 %v1872
        %v2008 = vunpack.c.l.b16 %v1873
        %v2009 = vunpack.c.l.b16 %v1874
        %v2010 = vunpack.c.l.b16 %v1875
        %v2011 = vunpack.c.l.b16 %v1876
        %v2012 = vunpack.c.l.b16 %v1877
        %v2013 = vunpack.c.l.b16 %v1878
        %v2014 = vunpack.c.l.b16 %v1879
        %v2015 = vunpack.c.l.b16 %v1880
        %v2016 = vunpack.c.l.b16 %v1881
        %v2017 = vunpack.c.l.b16 %v1882
        %v2018 = vunpack.c.l.b16 %v1883
        %v2019 = vunpack.c.l.b16 %v1884
        %v2020 = vunpack.c.l.b16 %v1885
        %v2021 = vunpack.c.l.b16 %v1886
        %v2022 = vunpack.c.l.b16 %v1887
        %v2023 = vunpack.c.l.b16 %v1888
        %v2024 = vunpack.c.l.b16 %v1889
        %v2025 = vunpack.c.l.b16 %v1890
        %v2026 = vunpack.c.l.b16 %v1891
        %v2027 = vunpack.c.l.b16 %v1892
        %v2028 = vunpack.c.l.b16 %v1893
        %v2029 = vunpack.c.l.b16 %v1894
        %v2030 = vunpack.c.l.b16 %v1895
        %v2031 = vunpack.c.l.b16 %v1896
        %v2032 = vunpack.c.l.b16 %v1897
        %v2033 = vunpack.c.l.b16 %v1898
        %v2034 = vunpack.c.l.b16 %v1899
        %v2035 = vunpack.c.l.b16 %v1900
        %v2036 = vunpack.c.l.b16 %v1901
        %v2037 = vunpack.c.l.b16 %v1902
        %v2038 = vunpack.c.l.b16 %v1903
        %v2039 = vunpack.c.l.b16 %v1904
        %v2040 = vunpack.c.l.b16 %v1905
        %v2041 = vunpack.c.l.b16 %v1906
        %v2042 = vunpack.c.l.b16 %v1907
        %v2043 = vunpack.c.l.b16 %v1908
        %v2044 = vunpack.c.l.b16 %v1909
        %v2045 = vunpack.c.l.b16 %v1910
        %v2046 = vpack.c.b16 %v1983, %v1982
        %v2047 = vpack.c.b16 %v1985, %v1984
        %v2048 = vpack.c.b16 %v1987, %v1986
        %v2049 = vpack.c.b16 %v1989, %v1988
        %v2050 = vpack.c.b16 %v1991, %v1990
        %v2051 = vpack.c.b16 %v1993, %v1992
        %v2052 = vpack.c.b16 %v1995, %v1994
        %v2053 = vpack.c.b16 %v1997, %v1996
        %v2054 = vpack.c.b16 %v1999, %v1998
        %v2055 = vpack.c.b16 %v2001, %v2000
        %v2056 = vpack.c.b16 %v2003, %v2002
        %v2057 = vpack.c.b16 %v2005, %v2004
        %v2058 = vpack.c.b16 %v2007, %v2006
        %v2059 = vpack.c.b16 %v2009, %v2008
        %v2060 = vpack.c.b16 %v2011, %v2010
        %v2061 = vpack.c.b16 %v2013, %v2012
        %v2062 = vpack.c.b16 %v2015, %v2014
        %v2063 = vpack.c.b16 %v2017, %v2016
        %v2064 = vpack.c.b16 %v2019, %v2018
        %v2065 = vpack.c.b16 %v2021, %v2020
        %v2066 = vpack.c.b16 %v2023, %v2022
        %v2067 = vpack.c.b16 %v2025, %v2024
        %v2068 = vpack.c.b16 %v2027, %v2026
        %v2069 = vpack.c.b16 %v2029, %v2028
        %v2070 = vpack.c.b16 %v2031, %v2030
        %v2071 = vpack.c.b16 %v2033, %v2032
        %v2072 = vpack.c.b16 %v2035, %v2034
        %v2073 = vpack.c.b16 %v2037, %v2036
        %v2074 = vpack.c.b16 %v2039, %v2038
        %v2075 = vpack.c.b16 %v2041, %v2040
        %v2076 = vpack.c.b16 %v2043, %v2042
        %v2077 = vpack.c.b16 %v2045, %v2044
        %2110 = vmatprep.subr.bf16.mxu0 0
        %2111 = vmatpush1.bf16.msra.mxu0 %v2046
        %2112 = vmatprep.subr.bf16.mxu0 0
        %2113 = vmatpush1.bf16.msra.mxu0 %v2047
        %2114 = vmatprep.subr.bf16.mxu0 0
        %2115 = vmatpush1.bf16.msra.mxu0 %v2048
        %2116 = vmatprep.subr.bf16.mxu0 0
        %2117 = vmatpush1.bf16.msra.mxu0 %v2049
        %2118 = vmatprep.subr.bf16.mxu0 0
        %2119 = vmatpush1.bf16.msra.mxu0 %v2050
        %2120 = vmatprep.subr.bf16.mxu0 0
        %2121 = vmatpush1.bf16.msra.mxu0 %v2051
        %2122 = vmatprep.subr.bf16.mxu0 0
        %2123 = vmatpush1.bf16.msra.mxu0 %v2052
        %2124 = vmatprep.subr.bf16.mxu0 0
        %2125 = vmatpush1.bf16.msra.mxu0 %v2053
        %2126 = vmatprep.subr.bf16.mxu0 0
        %2127 = vmatpush1.bf16.msra.mxu0 %v2054
        %2128 = vmatprep.subr.bf16.mxu0 0
        %2129 = vmatpush1.bf16.msra.mxu0 %v2055
        %2130 = vmatprep.subr.bf16.mxu0 0
        %2131 = vmatpush1.bf16.msra.mxu0 %v2056
        %2132 = vmatprep.subr.bf16.mxu0 0
        %2133 = vmatpush1.bf16.msra.mxu0 %v2057
        %2134 = vmatprep.subr.bf16.mxu0 0
        %2135 = vmatpush1.bf16.msra.mxu0 %v2058
        %2136 = vmatprep.subr.bf16.mxu0 0
        %2137 = vmatpush1.bf16.msra.mxu0 %v2059
        %2138 = vmatprep.subr.bf16.mxu0 0
        %2139 = vmatpush1.bf16.msra.mxu0 %v2060
        %2140 = vmatprep.subr.bf16.mxu0 0
        %2141 = vmatpush1.bf16.msra.mxu0 %v2061
        %2142 = vmatprep.mubr.bf16.mxu0 %v1844
        %2143 = vmatmul.mubr.bf16.gmra.mrb[0].mxu0 %v1843
        %v2144 = vpop.f32.mrb[0].mxu0
        %v2145 = vadd.f32 %v1916, %v2144
        %v2146 = vpop.f32.mrb[0].mxu0
        %v2147 = vpop.f32.mrb[0].mxu0
        %v2148 = vpop.f32.mrb[0].mxu0
        %2149 = vdwg.mxu0
        %2150 = vmatprep.subr.bf16.mxu0 0
        %2151 = vmatpush1.bf16.msra.mxu0 %v2062
        %2152 = vmatprep.subr.bf16.mxu0 0
        %2153 = vmatpush1.bf16.msra.mxu0 %v2063
        %2154 = vmatprep.subr.bf16.mxu0 0
        %2155 = vmatpush1.bf16.msra.mxu0 %v2064
        %2156 = vmatprep.subr.bf16.mxu0 0
        %2157 = vmatpush1.bf16.msra.mxu0 %v2065
        %2158 = vmatprep.subr.bf16.mxu0 0
        %2159 = vmatpush1.bf16.msra.mxu0 %v2066
        %2160 = vmatprep.subr.bf16.mxu0 0
        %2161 = vmatpush1.bf16.msra.mxu0 %v2067
        %2162 = vmatprep.subr.bf16.mxu0 0
        %2163 = vmatpush1.bf16.msra.mxu0 %v2068
        %2164 = vmatprep.subr.bf16.mxu0 0
        %2165 = vmatpush1.bf16.msra.mxu0 %v2069
        %2166 = vmatprep.subr.bf16.mxu0 0
        %2167 = vmatpush1.bf16.msra.mxu0 %v2070
        %2168 = vmatprep.subr.bf16.mxu0 0
        %2169 = vmatpush1.bf16.msra.mxu0 %v2071
        %2170 = vmatprep.subr.bf16.mxu0 0
        %2171 = vmatpush1.bf16.msra.mxu0 %v2072
        %2172 = vmatprep.subr.bf16.mxu0 0
        %2173 = vmatpush1.bf16.msra.mxu0 %v2073
        %2174 = vmatprep.subr.bf16.mxu0 0
        %2175 = vmatpush1.bf16.msra.mxu0 %v2074
        %2176 = vmatprep.subr.bf16.mxu0 0
        %2177 = vmatpush1.bf16.msra.mxu0 %v2075
        %2178 = vmatprep.subr.bf16.mxu0 0
        %2179 = vmatpush1.bf16.msra.mxu0 %v2076
        %2180 = vmatprep.subr.bf16.mxu0 0
        %2181 = vmatpush1.bf16.msra.mxu0 %v2077
        %2182 = vmatprep.mubr.bf16.mxu0 %v1846
        %2183 = vmatmul.mubr.bf16.gmra.mrb[0].mxu0 %v1845
        %v2184 = vpop.f32.mrb[0].mxu0
        %v2185 = vadd.f32 %v2145, %v2184
        %v2186 = vpop.f32.mrb[0].mxu0
        %v2187 = vpop.f32.mrb[0].mxu0
        %v2188 = vpop.f32.mrb[0].mxu0
        %2189 = vdwg.mxu0
        %2190 = vst [vmem:[%s460] sm:$0xff] %v2185
        %s2191 = sand.u32 %s254, 1
        %s2192 = scalar_lea.sflag [#allocation4], %s2191
        %s2193 = sand.u32 %s254, 1
        %s2194 = smul.addr %s2193, 8
        %s2195 = scalar_lea.vmem [#allocation13], %s2194
        // Predicated region
        $region81: #{tpu_custom_call.1} parent=55 // pred_check
          %p2196 = pneg %p264
        $region82: #{tpu_custom_call.1} parent=55 // pred_check_branch
          %2198 = sbr.rel (%p2196) target = $region84
        $region83: #{tpu_custom_call.1} parent=55 // pred_region
          %s2200 = ssub.s32 128, 128
          %2201 = vsyncadd %s2192, %s2200
          %s2202 = smul.addr %s36, 2
          %s2203 = sadd.s32 %s35, %s2202
          %s2204 = smul.addr %s2203, 128
          %s2205 = scalar_lea.hbm %s9, %s2204
          %s2207 = sshll.u32 %s2195, 4
          %s2208 = int_to_ptr.vmem [resolvable:$true] %s2207
          %2210 = dma.vmem_to_hbm [thread:$0]  %s2208, 128, %s2205, %s2192
        $region84: #{tpu_custom_call.1} parent=55 // pred_fallthru
          _
      $region56: #{tpu_custom_call.1} parent=5 // pred_fallthru
        _
      %p2211 = scmp.le.s32.totalorder 2, %s26
      // Predicated region
      $region85: #{tpu_custom_call.1} parent=5 // pred_check
        %p2212 = pneg %p2211
      $region86: #{tpu_custom_call.1} parent=5 // pred_check_branch
        %2214 = sbr.rel (%p2212) target = $region88
      $region87: #{tpu_custom_call.1} parent=5 // pred_region
        %s2215 = ssub.s32 %s26, 2
        // Predicated region
        $region89: #{tpu_custom_call.1} parent=87 // pred_check
          %p2216 = pneg %p270
        $region90: #{tpu_custom_call.1} parent=87 // pred_check_branch
          %2218 = sbr.rel (%p2216) target = $region92
        $region91: #{tpu_custom_call.1} parent=87 // pred_region
          %s2219 = sand.u32 %s255, 1
          %s2220 = scalar_lea.sflag [#allocation4], %s2219
          %s2221 = sand.u32 %s255, 1
          %s2222 = smul.addr %s2221, 8
          %s2223 = scalar_lea.vmem [#allocation13], %s2222
          %2224 = dma.done %s2220, 128
        $region92: #{tpu_custom_call.1} parent=87 // pred_fallthru
          _
      $region88: #{tpu_custom_call.1} parent=5 // pred_fallthru
        _
    $region6: #{tpu_custom_call.1} parent=1 // loop_footer
      %s30 = sadd.s32 1, %s26
    $region7: #{tpu_custom_call.1} parent=1 // loop_footer_branch
      %25 = sbr.rel target = $region3
    $region8: #{tpu_custom_call.1} parent=1 // loop_exit
      _
    %2225 = vsyncpa [#allocation3], 1
    %s2226 = scalar_lea.sflag [#allocation3], 1
    %2227 = vsyncpa %s2226, 1
    %2228 = vsyncpa [#allocation6], 1
    %s2229 = scalar_lea.sflag [#allocation6], 1
    %2230 = vsyncpa %s2229, 1
    %2231 = vsyncpa [#allocation9], 1
    %2232 = vsyncpa [#allocation12], 1
    %2233 = vsyncpa [#allocation4], 1
    %s2234 = scalar_lea.sflag [#allocation4], 1
    %2235 = vsyncpa %s2234, 1

</llo_original>
